<compile_context>
chip_gen: v6e
topology: v6e:2x2x1
jax: 0.10.0
libtpu: 0.0.40
codegen_flags: <defaults>
</compile_context>

<pallas_src>
import jax
import jax.numpy as jnp
from jax.experimental import pallas as pl
from jax.experimental.pallas import tpu as pltpu


def _round_up(v, m):
    return ((v + m - 1) // m) * m


# ----------------------------------------------------------------------------
# Kernel: four chained lane-dense GEMMs (bf16 in, f32 accumulate) + softmax.
# ----------------------------------------------------------------------------
def discriminator_kernel(x_ref, w1_ref, b1_ref, w2_ref, b2_ref,
                         fw1_ref, fb1_ref, fw2_ref, fb2_ref, out_ref):
    # Conv2d(1,10,5) + ReLU   ==  (TB,144) @ (144,640) Toeplitz GEMM
    h1 = jnp.dot(x_ref[...], w1_ref[...], preferred_element_type=jnp.float32)
    h1 = jnp.maximum(h1 + b1_ref[...], 0.0)                     # (TB, 640) f32

    # Conv2d(10,20,5) + ReLU  ==  (TB,640) @ (640,320) Toeplitz GEMM
    h2 = jnp.dot(h1.astype(jnp.bfloat16), w2_ref[...],
                 preferred_element_type=jnp.float32)
    h2 = jnp.maximum(h2 + b2_ref[...], 0.0)                     # (TB, 320) f32

    # Flatten + Dropout2d (eval identity) + Linear(320,50) + ReLU
    # (fw1 rows were permuted in the wrapper to h2's column order, so the
    #  flatten is a free no-op here.)
    z1 = jnp.dot(h2.astype(jnp.bfloat16), fw1_ref[...],
                 preferred_element_type=jnp.float32)
    z1 = jnp.maximum(z1 + fb1_ref[...], 0.0)                    # (TB, 50) f32

    # Linear(50,2) + Softmax, lane-padded to 128 (pad bias = -1e30 -> exp = 0)
    z2 = jnp.dot(z1.astype(jnp.bfloat16), fw2_ref[...],
                 preferred_element_type=jnp.float32) + fb2_ref[...]
    z2 = z2 - jnp.max(z2, axis=-1, keepdims=True)
    e = jnp.exp(z2)
    out_ref[...] = e / jnp.sum(e, axis=-1, keepdims=True)       # (TB, 128)


# ----------------------------------------------------------------------------
# Wrapper-side (one-time) Toeplitz weight construction — pure layout work.
# ----------------------------------------------------------------------------
def _conv1_toeplitz(w1_t):
    """(10,1,5,5) -> (144, 640). rows = ih*12+iw, cols = oh*80 + ow*10 + c."""
    w1_hwc = jnp.transpose(w1_t[:, 0], (1, 2, 0))                # (5,5,10)
    d = jnp.arange(12)[:, None] - jnp.arange(8)[None, :]         # (12,8) offsets
    valid = (d >= 0) & (d < 5)
    dc = jnp.clip(d, 0, 4)
    W = w1_hwc[dc[:, None, :, None], dc[None, :, None, :], :]    # (12,12,8,8,10)
    mask = (valid[:, None, :, None] & valid[None, :, None, :])[..., None]
    return jnp.where(mask, W, 0.0).reshape(144, 640)


def _conv2_toeplitz(w2_t):
    """(20,10,5,5) -> (640, 320).
    rows = oh1*80 + ow1*10 + c1 (h1 cols), cols = oh2*80 + ow2*20 + c2 (h2 cols)."""
    w2_hwio = jnp.transpose(w2_t, (2, 3, 1, 0))                  # (5,5,10,20)
    d = jnp.arange(8)[:, None] - jnp.arange(4)[None, :]          # (8,4) offsets
    valid = (d >= 0) & (d < 5)
    dc = jnp.clip(d, 0, 4)
    W = w2_hwio[dc[:, None, :, None], dc[None, :, None, :]]      # (8,8,4,4,10,20)
    mask = (valid[:, None, :, None] & valid[None, :, None, :])[..., None, None]
    W = jnp.where(mask, W, 0.0)
    return jnp.transpose(W, (0, 1, 4, 2, 3, 5)).reshape(640, 320)


def discriminator_forward(x_nchw, params, tb=512):
    """x_nchw: (B, 1, 12, 12) float32. params in PyTorch shapes/orders."""
    w1_t, b1, w2_t, b2, fw1_t, fb1, fw2_t, fb2 = params
    B = x_nchw.shape[0]

    # ---- one-time layout-only preprocessing (no per-sample arithmetic) ------
    x = x_nchw.reshape(B, 144).astype(jnp.bfloat16)              # raw pixels
    w1T = _conv1_toeplitz(w1_t).astype(jnp.bfloat16)             # (144, 640)
    w2T = _conv2_toeplitz(w2_t).astype(jnp.bfloat16)             # (640, 320)
    # torch fc1 weight (50,320) flattens NCHW (c2,oh2,ow2); permute rows to
    # h2's (oh2, ow2, c2) column order.
    fw1 = jnp.transpose(fw1_t.reshape(50, 20, 4, 4),
                        (2, 3, 1, 0)).reshape(320, 50).astype(jnp.bfloat16)
    fw2 = jnp.pad(fw2_t.T, ((0, 0), (0, 126))).astype(jnp.bfloat16)   # (50, 128)
    b1r = jnp.tile(b1, 64).reshape(1, 640).astype(jnp.float32)   # c fastest
    b2r = jnp.tile(b2, 16).reshape(1, 320).astype(jnp.float32)   # c2 fastest
    fb1r = fb1.reshape(1, 50).astype(jnp.float32)
    fb2p = jnp.concatenate([fb2.astype(jnp.float32),
                            jnp.full((126,), -1e30, jnp.float32)]).reshape(1, 128)

    # ---- batch tiling: tb multiple of 8; >=2 grid steps when the batch
    #      allows so v7x's two TensorCores both get work. ---------------------
    B8 = _round_up(B, 8)
    tb = max(8, (min(tb, B8, 512) // 8) * 8)
    nblk = -(-B8 // tb)
    if nblk == 1 and B8 >= 16:
        nblk = 2
    tb = _round_up(-(-B8 // nblk), 8)
    B_pad = tb * nblk
    if B_pad != B:
        x = jnp.pad(x, ((0, B_pad - B), (0, 0)))

    weights = (w1T, b1r, w2T, b2r, fw1, fb1r, fw2, fb2p)

    def full(a):
        return pl.BlockSpec(a.shape, lambda i: (0,) * a.ndim)

    flops = 2 * B_pad * (144 * 640 + 640 * 320 + 320 * 50 + 50 * 128)
    bytes_accessed = (x.size * x.dtype.itemsize
                      + sum(int(w.size) * w.dtype.itemsize for w in weights)
                      + B_pad * 128 * 4)

    out = pl.pallas_call(
        discriminator_kernel,
        out_shape=jax.ShapeDtypeStruct((B_pad, 128), jnp.float32),
        grid=(nblk,),
        in_specs=[pl.BlockSpec((tb, 144), lambda i: (i, 0))]
                 + [full(a) for a in weights],
        out_specs=pl.BlockSpec((tb, 128), lambda i: (i, 0)),
        compiler_params=pltpu.CompilerParams(
            dimension_semantics=("parallel",)),
        cost_estimate=pl.CostEstimate(
            flops=int(flops),
            transcendentals=int(B_pad * 128),
            bytes_accessed=int(bytes_accessed)),
    )(x, *weights)

    # 128-lane output kept lane-dense in the kernel; slice the 2 real classes.
    return out[:B, :2]


# ----------------------------------------------------------------------------
# Deterministic init (PyTorch parameter shapes) and pure-JAX f32 reference.
# ----------------------------------------------------------------------------
def init_params(key):
    ks = jax.random.split(key, 8)

    def u(k, shape, fan_in):
        bound = 1.0 / (fan_in ** 0.5)
        return jax.random.uniform(k, shape, jnp.float32, -bound, bound)

    w1 = u(ks[0], (10, 1, 5, 5), 1 * 25)
    b1 = u(ks[1], (10,), 1 * 25)
    w2 = u(ks[2], (20, 10, 5, 5), 10 * 25)
    b2 = u(ks[3], (20,), 10 * 25)
    fw1 = u(ks[4], (50, 320), 320)
    fb1 = u(ks[5], (50,), 320)
    fw2 = u(ks[6], (2, 50), 50)
    fb2 = u(ks[7], (2,), 50)
    return (w1, b1, w2, b2, fw1, fb1, fw2, fb2)


def reference_forward(x_nchw, params):
    """Pure-JAX (XLA, f32) reference mirroring the PyTorch forward (eval mode)."""
    w1, b1, w2, b2, fw1, fb1, fw2, fb2 = params
    dn = ('NCHW', 'OIHW', 'NCHW')
    y = jax.lax.conv_general_dilated(x_nchw, w1, (1, 1), 'VALID', dimension_numbers=dn)
    y = jax.nn.relu(y + b1.reshape(1, 10, 1, 1))
    y = jax.lax.conv_general_dilated(y, w2, (1, 1), 'VALID', dimension_numbers=dn)
    y = jax.nn.relu(y + b2.reshape(1, 20, 1, 1))
    y = y.reshape(y.shape[0], -1)                   # (B, 320), CHW order
    y = jax.nn.relu(y @ fw1.T + fb1)
    y = y @ fw2.T + fb2
    return jax.nn.softmax(y, axis=1)


if __name__ == "__main__":
    key = jax.random.PRNGKey(0)
    kx, kp = jax.random.split(key)

    B = 2
    x = jax.random.normal(kx, (B, 1, 12, 12), jnp.float32)   # NCHW, like PyTorch
    params = init_params(kp)

    out = jax.block_until_ready(discriminator_forward(x, params))
    ref = jax.block_until_ready(reference_forward(x, params))

    assert out.shape == (B, 2)
    assert jnp.allclose(jnp.sum(out, axis=1), 1.0, atol=1e-5)
    # bf16 MXU operands (f32 accumulation) -> looser tolerance vs the f32 ref.
    assert jnp.allclose(out, ref, rtol=2e-2, atol=1e-2), (
        f"max abs diff {float(jnp.max(jnp.abs(out - ref)))}")

    print("KERNEL_OK")
</pallas_src>

<mosaic_0001>
module attributes {stable_mosaic.version = 11 : i64} {
  func.func @discriminator_kernel(%arg0: i32, %arg1: memref<8x144xbf16, #tpu.memory_space<vmem>>, %arg2: memref<144x640xbf16, #tpu.memory_space<vmem>>, %arg3: memref<1x640xf32, #tpu.memory_space<vmem>>, %arg4: memref<640x320xbf16, #tpu.memory_space<vmem>>, %arg5: memref<1x320xf32, #tpu.memory_space<vmem>>, %arg6: memref<320x50xbf16, #tpu.memory_space<vmem>>, %arg7: memref<1x50xf32, #tpu.memory_space<vmem>>, %arg8: memref<50x128xbf16, #tpu.memory_space<vmem>>, %arg9: memref<1x128xf32, #tpu.memory_space<vmem>>, %arg10: memref<8x128xf32, #tpu.memory_space<vmem>>) attributes {dimension_semantics = [#tpu.dimension_semantics<parallel>], iteration_bounds = array<i64: 1>, scalar_prefetch = 0 : i64, scratch_operands = 0 : i64, tpu.core_type = #tpu.core_type<tc>, window_params = [{transform_indices = @transform_0, window_bounds = array<i64: 8, 144>}, {pipeline_mode = #tpu.pipeline_mode<synchronous>, transform_indices = @transform_1, window_bounds = array<i64: 144, 640>}, {pipeline_mode = #tpu.pipeline_mode<synchronous>, transform_indices = @transform_2, window_bounds = array<i64: 1, 640>}, {pipeline_mode = #tpu.pipeline_mode<synchronous>, transform_indices = @transform_3, window_bounds = array<i64: 640, 320>}, {pipeline_mode = #tpu.pipeline_mode<synchronous>, transform_indices = @transform_4, window_bounds = array<i64: 1, 320>}, {pipeline_mode = #tpu.pipeline_mode<synchronous>, transform_indices = @transform_5, window_bounds = array<i64: 320, 50>}, {pipeline_mode = #tpu.pipeline_mode<synchronous>, transform_indices = @transform_6, window_bounds = array<i64: 1, 50>}, {pipeline_mode = #tpu.pipeline_mode<synchronous>, transform_indices = @transform_7, window_bounds = array<i64: 50, 128>}, {pipeline_mode = #tpu.pipeline_mode<synchronous>, transform_indices = @transform_8, window_bounds = array<i64: 1, 128>}, {transform_indices = @transform_9, window_bounds = array<i64: 8, 128>}]} {
    %c0 = arith.constant 0 : index
    %c0_0 = arith.constant 0 : index
    %0 = vector.load %arg1[%c0, %c0_0] : memref<8x144xbf16, #tpu.memory_space<vmem>>, vector<8x144xbf16>
    %c0_1 = arith.constant 0 : index
    %c0_2 = arith.constant 0 : index
    %1 = vector.load %arg2[%c0_1, %c0_2] : memref<144x640xbf16, #tpu.memory_space<vmem>>, vector<144x640xbf16>
    %cst = arith.constant dense<0.000000e+00> : vector<8x640xf32>
    %2 = tpu.matmul %0, %1, %cst {dimension_numbers = #tpu.dot_dimension_numbers<[1], [0], [0], [1], [0, 0, 1, 1], [], []>} : vector<8x144xbf16>, vector<144x640xbf16>, vector<8x640xf32> -> vector<8x640xf32>
    %c0_3 = arith.constant 0 : index
    %c0_4 = arith.constant 0 : index
    %3 = vector.load %arg3[%c0_3, %c0_4] : memref<1x640xf32, #tpu.memory_space<vmem>>, vector<1x640xf32>
    %4 = vector.broadcast %3 : vector<1x640xf32> to vector<8x640xf32>
    %5 = arith.addf %2, %4 : vector<8x640xf32>
    %cst_5 = arith.constant 0.000000e+00 : f32
    %6 = vector.broadcast %cst_5 : f32 to vector<8x640xf32>
    %7 = arith.maximumf %5, %6 : vector<8x640xf32>
    %8 = arith.truncf %7 : vector<8x640xf32> to vector<8x640xbf16>
    %c0_6 = arith.constant 0 : index
    %c0_7 = arith.constant 0 : index
    %9 = vector.load %arg4[%c0_6, %c0_7] : memref<640x320xbf16, #tpu.memory_space<vmem>>, vector<640x320xbf16>
    %cst_8 = arith.constant dense<0.000000e+00> : vector<8x320xf32>
    %10 = tpu.matmul %8, %9, %cst_8 {dimension_numbers = #tpu.dot_dimension_numbers<[1], [0], [0], [1], [0, 0, 1, 1], [], []>} : vector<8x640xbf16>, vector<640x320xbf16>, vector<8x320xf32> -> vector<8x320xf32>
    %c0_9 = arith.constant 0 : index
    %c0_10 = arith.constant 0 : index
    %11 = vector.load %arg5[%c0_9, %c0_10] : memref<1x320xf32, #tpu.memory_space<vmem>>, vector<1x320xf32>
    %12 = vector.broadcast %11 : vector<1x320xf32> to vector<8x320xf32>
    %13 = arith.addf %10, %12 : vector<8x320xf32>
    %cst_11 = arith.constant 0.000000e+00 : f32
    %14 = vector.broadcast %cst_11 : f32 to vector<8x320xf32>
    %15 = arith.maximumf %13, %14 : vector<8x320xf32>
    %16 = arith.truncf %15 : vector<8x320xf32> to vector<8x320xbf16>
    %c0_12 = arith.constant 0 : index
    %c0_13 = arith.constant 0 : index
    %17 = vector.load %arg6[%c0_12, %c0_13] : memref<320x50xbf16, #tpu.memory_space<vmem>>, vector<320x50xbf16>
    %cst_14 = arith.constant dense<0.000000e+00> : vector<8x50xf32>
    %18 = tpu.matmul %16, %17, %cst_14 {dimension_numbers = #tpu.dot_dimension_numbers<[1], [0], [0], [1], [0, 0, 1, 1], [], []>} : vector<8x320xbf16>, vector<320x50xbf16>, vector<8x50xf32> -> vector<8x50xf32>
    %c0_15 = arith.constant 0 : index
    %c0_16 = arith.constant 0 : index
    %19 = vector.load %arg7[%c0_15, %c0_16] : memref<1x50xf32, #tpu.memory_space<vmem>>, vector<1x50xf32>
    %20 = vector.broadcast %19 : vector<1x50xf32> to vector<8x50xf32>
    %21 = arith.addf %18, %20 : vector<8x50xf32>
    %cst_17 = arith.constant 0.000000e+00 : f32
    %22 = vector.broadcast %cst_17 : f32 to vector<8x50xf32>
    %23 = arith.maximumf %21, %22 : vector<8x50xf32>
    %24 = arith.truncf %23 : vector<8x50xf32> to vector<8x50xbf16>
    %c0_18 = arith.constant 0 : index
    %c0_19 = arith.constant 0 : index
    %25 = vector.load %arg8[%c0_18, %c0_19] : memref<50x128xbf16, #tpu.memory_space<vmem>>, vector<50x128xbf16>
    %cst_20 = arith.constant dense<0.000000e+00> : vector<8x128xf32>
    %26 = tpu.matmul %24, %25, %cst_20 {dimension_numbers = #tpu.dot_dimension_numbers<[1], [0], [0], [1], [0, 0, 1, 1], [], []>} : vector<8x50xbf16>, vector<50x128xbf16>, vector<8x128xf32> -> vector<8x128xf32>
    %c0_21 = arith.constant 0 : index
    %c0_22 = arith.constant 0 : index
    %27 = vector.load %arg9[%c0_21, %c0_22] : memref<1x128xf32, #tpu.memory_space<vmem>>, vector<1x128xf32>
    %28 = vector.broadcast %27 : vector<1x128xf32> to vector<8x128xf32>
    %29 = arith.addf %26, %28 : vector<8x128xf32>
    %cst_23 = arith.constant dense<0xFF800000> : vector<8xf32>
    %30 = vector.multi_reduction <maximumf>, %29, %cst_23 [1] : vector<8x128xf32> to vector<8xf32>
    %31 = vector.shape_cast %30 : vector<8xf32> to vector<8x1xf32>
    %32 = vector.broadcast %31 : vector<8x1xf32> to vector<8x128xf32>
    %33 = arith.subf %29, %32 : vector<8x128xf32>
    %34 = math.exp %33 : vector<8x128xf32>
    %cst_24 = arith.constant dense<0.000000e+00> : vector<8xf32>
    %35 = vector.multi_reduction <add>, %34, %cst_24 [1] : vector<8x128xf32> to vector<8xf32>
    %36 = vector.shape_cast %35 : vector<8xf32> to vector<8x1xf32>
    %37 = vector.broadcast %36 : vector<8x1xf32> to vector<8x128xf32>
    %38 = arith.divf %34, %37 : vector<8x128xf32>
    %c0_25 = arith.constant 0 : index
    %c0_26 = arith.constant 0 : index
    %39 = vector.load %arg10[%c0_25, %c0_26] : memref<8x128xf32, #tpu.memory_space<vmem>>, vector<8x128xf32>
    tpu.vector_store %arg10[%c0_25, %c0_26], %38 {strides = array<i32>} : memref<8x128xf32, #tpu.memory_space<vmem>>, vector<8x128xf32>,
    return
  }
  func.func @transform_0(%arg0: i32) -> (i32, i32) {
    %c0_i32 = arith.constant 0 : i32
    %c0_i32_0 = arith.constant 0 : i32
    return %arg0, %c0_i32 : i32, i32
  }
  func.func @transform_1(%arg0: i32) -> (i32, i32) {
    %c0_i32 = arith.constant 0 : i32
    %c0_i32_0 = arith.constant 0 : i32
    %c0_i32_1 = arith.constant 0 : i32
    return %c0_i32, %c0_i32_0 : i32, i32
  }
  func.func @transform_2(%arg0: i32) -> (i32, i32) {
    %c0_i32 = arith.constant 0 : i32
    %c0_i32_0 = arith.constant 0 : i32
    %c0_i32_1 = arith.constant 0 : i32
    return %c0_i32, %c0_i32_0 : i32, i32
  }
  func.func @transform_3(%arg0: i32) -> (i32, i32) {
    %c0_i32 = arith.constant 0 : i32
    %c0_i32_0 = arith.constant 0 : i32
    %c0_i32_1 = arith.constant 0 : i32
    return %c0_i32, %c0_i32_0 : i32, i32
  }
  func.func @transform_4(%arg0: i32) -> (i32, i32) {
    %c0_i32 = arith.constant 0 : i32
    %c0_i32_0 = arith.constant 0 : i32
    %c0_i32_1 = arith.constant 0 : i32
    return %c0_i32, %c0_i32_0 : i32, i32
  }
  func.func @transform_5(%arg0: i32) -> (i32, i32) {
    %c0_i32 = arith.constant 0 : i32
    %c0_i32_0 = arith.constant 0 : i32
    %c0_i32_1 = arith.constant 0 : i32
    return %c0_i32, %c0_i32_0 : i32, i32
  }
  func.func @transform_6(%arg0: i32) -> (i32, i32) {
    %c0_i32 = arith.constant 0 : i32
    %c0_i32_0 = arith.constant 0 : i32
    %c0_i32_1 = arith.constant 0 : i32
    return %c0_i32, %c0_i32_0 : i32, i32
  }
  func.func @transform_7(%arg0: i32) -> (i32, i32) {
    %c0_i32 = arith.constant 0 : i32
    %c0_i32_0 = arith.constant 0 : i32
    %c0_i32_1 = arith.constant 0 : i32
    return %c0_i32, %c0_i32_0 : i32, i32
  }
  func.func @transform_8(%arg0: i32) -> (i32, i32) {
    %c0_i32 = arith.constant 0 : i32
    %c0_i32_0 = arith.constant 0 : i32
    %c0_i32_1 = arith.constant 0 : i32
    return %c0_i32, %c0_i32_0 : i32, i32
  }
  func.func @transform_9(%arg0: i32) -> (i32, i32) {
    %c0_i32 = arith.constant 0 : i32
    %c0_i32_0 = arith.constant 0 : i32
    return %arg0, %c0_i32 : i32, i32
  }
}

</mosaic_0001>

<llo_original>
// kernel: tpu_custom_call.1
$region0: #{tpu_custom_call.1}
  #allocation0 [shape = 'u32[]', space=smem, size = 0x4, offset = 0x4, fixed_abs, tag = 'smem constant byte address 0x4 - core index']
  #allocation1 [shape = 'u32[144,128]{1,0:T(1,128)}', space=vmem, size = 0x12000, scoped, tag = 'internal scratch']
  %s0 = inlined_call_operand.vmem [shape: bf16[8,144], index: 0, kind: input, shape index: {}]
  %s1 = inlined_call_operand.vmem [shape: bf16[144,640], index: 1, kind: input, shape index: {}]
  %s2 = inlined_call_operand.vmem [shape: f32[1,640], index: 2, kind: input, shape index: {}]
  %s3 = inlined_call_operand.vmem [shape: bf16[640,320], index: 3, kind: input, shape index: {}]
  %s4 = inlined_call_operand.vmem [shape: f32[1,320], index: 4, kind: input, shape index: {}]
  %s5 = inlined_call_operand.vmem [shape: bf16[320,50], index: 5, kind: input, shape index: {}]
  %s6 = inlined_call_operand.vmem [shape: f32[1,50], index: 6, kind: input, shape index: {}]
  %s7 = inlined_call_operand.vmem [shape: bf16[50,128], index: 7, kind: input, shape index: {}]
  %s8 = inlined_call_operand.vmem [shape: f32[1,128], index: 8, kind: input, shape index: {}]
  %s9 = inlined_call_operand.hbm [shape: f32[8,128], index: 9, kind: output, shape index: {}]
  %s10 = sld [smem:[#allocation0]]
  $region46: #{tpu_custom_call.1} parent=0
    _
  %s12 = ssub.s32 1, %s10
  %s13 = scalar_select 0, %s12, %s10
  $region1: #{tpu_custom_call.1} parent=0
    #allocation2 [shape = 'u8[4096]{0}', space=vmem, size = 0x1000, scoped, tag = 'output window, operand 0, single buffered']
    #allocation3 [shape = 's32[1]{0}', space=sflag, size = 0x4, scoped, tag = 'scoped memory for tpu_custom_call.1']
    %14 = vsyncpa [#allocation3], 0
    // Predicated region
    $region2: #{tpu_custom_call.1} parent=1 // pred_check
      _
    $region3: #{tpu_custom_call.1} parent=1 // pred_check_branch
      %16 = sbr.rel (0) target = $region5
    $region4: #{tpu_custom_call.1} parent=1 // pred_region
      _
    $region5: #{tpu_custom_call.1} parent=1 // pred_fallthru
      _
    // Predicated region
    $region6: #{tpu_custom_call.1} parent=1 // pred_check
      _
    $region7: #{tpu_custom_call.1} parent=1 // pred_check_branch
      %18 = sbr.rel (0) target = $region9
    $region8: #{tpu_custom_call.1} parent=1 // pred_region
      _
    $region9: #{tpu_custom_call.1} parent=1 // pred_fallthru
      _
    // Predicated region
    $region10: #{tpu_custom_call.1} parent=1 // pred_check
      _
    $region11: #{tpu_custom_call.1} parent=1 // pred_check_branch
      %20 = sbr.rel (0) target = $region13
    $region12: #{tpu_custom_call.1} parent=1 // pred_region
      _
    $region13: #{tpu_custom_call.1} parent=1 // pred_fallthru
      _
    // Predicated region
    $region14: #{tpu_custom_call.1} parent=1 // pred_check
      _
    $region15: #{tpu_custom_call.1} parent=1 // pred_check_branch
      %22 = sbr.rel (0) target = $region17
    $region16: #{tpu_custom_call.1} parent=1 // pred_region
      _
    $region17: #{tpu_custom_call.1} parent=1 // pred_fallthru
      _
    // Predicated region
    $region18: #{tpu_custom_call.1} parent=1 // pred_check
      _
    $region19: #{tpu_custom_call.1} parent=1 // pred_check_branch
      %24 = sbr.rel (0) target = $region21
    $region20: #{tpu_custom_call.1} parent=1 // pred_region
      _
    $region21: #{tpu_custom_call.1} parent=1 // pred_fallthru
      _
    // Predicated region
    $region22: #{tpu_custom_call.1} parent=1 // pred_check
      _
    $region23: #{tpu_custom_call.1} parent=1 // pred_check_branch
      %26 = sbr.rel (0) target = $region25
    $region24: #{tpu_custom_call.1} parent=1 // pred_region
      _
    $region25: #{tpu_custom_call.1} parent=1 // pred_fallthru
      _
    // Predicated region
    $region26: #{tpu_custom_call.1} parent=1 // pred_check
      _
    $region27: #{tpu_custom_call.1} parent=1 // pred_check_branch
      %28 = sbr.rel (0) target = $region29
    $region28: #{tpu_custom_call.1} parent=1 // pred_region
      _
    $region29: #{tpu_custom_call.1} parent=1 // pred_fallthru
      _
    // Predicated region
    $region30: #{tpu_custom_call.1} parent=1 // pred_check
      _
    $region31: #{tpu_custom_call.1} parent=1 // pred_check_branch
      %30 = sbr.rel (0) target = $region33
    $region32: #{tpu_custom_call.1} parent=1 // pred_region
      _
    $region33: #{tpu_custom_call.1} parent=1 // pred_fallthru
      _
    // Predicated region
    $region34: #{tpu_custom_call.1} parent=1 // pred_check
      _
    $region35: #{tpu_custom_call.1} parent=1 // pred_check_branch
      %32 = sbr.rel (0) target = $region37
    $region36: #{tpu_custom_call.1} parent=1 // pred_region
      _
    $region37: #{tpu_custom_call.1} parent=1 // pred_fallthru
      _
    %v34 = vld [vmem:[%s0] sm:$0xff]
    %v35 = vld [vmem:[%s1] sm:$0xff]
    %v36 = vld [vmem:[%s1 + $0x8] sm:$0xff]
    %v37 = vld [vmem:[%s1 + $0x10] sm:$0xf]
    %v38 = vld [vmem:[%s1 + $0x14] sm:$0xff]
    %v39 = vld [vmem:[%s1 + $0x1c] sm:$0xff]
    %v40 = vld [vmem:[%s1 + $0x24] sm:$0xf]
    %v41 = vld [vmem:[%s1 + $0x28] sm:$0xff]
    %v42 = vld [vmem:[%s1 + $0x30] sm:$0xff]
    %v43 = vld [vmem:[%s1 + $0x38] sm:$0xf]
    %v44 = vld [vmem:[%s1 + $0x3c] sm:$0xff]
    %v45 = vld [vmem:[%s1 + $0x44] sm:$0xff]
    %v46 = vld [vmem:[%s1 + $0x4c] sm:$0xf]
    %v47 = vld [vmem:[%s1 + $0x50] sm:$0xff]
    %v48 = vld [vmem:[%s1 + $0x58] sm:$0xff]
    %v49 = vld [vmem:[%s1 + $0x60] sm:$0xf]
    %v50 = vld [vmem:[%s1 + $0x64] sm:$0xff]
    %v51 = vld [vmem:[%s1 + $0x6c] sm:$0xff]
    %v52 = vld [vmem:[%s1 + $0x74] sm:$0xf]
    %v53 = vld [vmem:[%s1 + $0x78] sm:$0xff]
    %v54 = vld [vmem:[%s1 + $0x80] sm:$0xff]
    %v55 = vld [vmem:[%s1 + $0x88] sm:$0xf]
    %v56 = vld [vmem:[%s1 + $0x8c] sm:$0xff]
    %v57 = vld [vmem:[%s1 + $0x94] sm:$0xff]
    %v58 = vld [vmem:[%s1 + $0x9c] sm:$0xf]
    %v59 = vld [vmem:[%s1 + $0xa0] sm:$0xff]
    %v60 = vld [vmem:[%s1 + $0xa8] sm:$0xff]
    %v61 = vld [vmem:[%s1 + $0xb0] sm:$0xf]
    %v62 = vld [vmem:[%s1 + $0xb4] sm:$0xff]
    %v63 = vld [vmem:[%s1 + $0xbc] sm:$0xff]
    %v64 = vld [vmem:[%s1 + $0xc4] sm:$0xf]
    %v65 = vld [vmem:[%s1 + $0xc8] sm:$0xff]
    %v66 = vld [vmem:[%s1 + $0xd0] sm:$0xff]
    %v67 = vld [vmem:[%s1 + $0xd8] sm:$0xf]
    %v68 = vld [vmem:[%s1 + $0xdc] sm:$0xff]
    %v69 = vld [vmem:[%s1 + $0xe4] sm:$0xff]
    %v70 = vld [vmem:[%s1 + $0xec] sm:$0xf]
    %v71 = vld [vmem:[%s1 + $0xf0] sm:$0xff]
    %v72 = vld [vmem:[%s1 + $0xf8] sm:$0xff]
    %v73 = vld [vmem:[%s1 + $0x100] sm:$0xf]
    %v74 = vld [vmem:[%s1 + $0x104] sm:$0xff]
    %v75 = vld [vmem:[%s1 + $0x10c] sm:$0xff]
    %v76 = vld [vmem:[%s1 + $0x114] sm:$0xf]
    %v77 = vld [vmem:[%s1 + $0x118] sm:$0xff]
    %v78 = vld [vmem:[%s1 + $0x120] sm:$0xff]
    %v79 = vld [vmem:[%s1 + $0x128] sm:$0xf]
    %v80 = vld [vmem:[%s1 + $0x12c] sm:$0xff]
    %v81 = vld [vmem:[%s1 + $0x134] sm:$0xff]
    %v82 = vld [vmem:[%s1 + $0x13c] sm:$0xf]
    %v83 = vld [vmem:[%s1 + $0x140] sm:$0xff]
    %v84 = vld [vmem:[%s1 + $0x148] sm:$0xff]
    %v85 = vld [vmem:[%s1 + $0x150] sm:$0xf]
    %v86 = vld [vmem:[%s1 + $0x154] sm:$0xff]
    %v87 = vld [vmem:[%s1 + $0x15c] sm:$0xff]
    %v88 = vld [vmem:[%s1 + $0x164] sm:$0xf]
    %v89 = vld [vmem:[%s2] sm:$0x1f]
    %v91 = vlaneseq
    %v92 = vshrl.u32 %v91, 7
    %v93 = vsub.s32 0, %v92
    %v94 = vrot.slane %v89, %v93
    %v95 = vlaneseq
    %v96 = vshrl.u32 %v95, 7
    %v97 = vsub.s32 1, %v96
    %v98 = vrot.slane %v89, %v97
    %v99 = vlaneseq
    %v100 = vshrl.u32 %v99, 7
    %v101 = vsub.s32 2, %v100
    %v102 = vrot.slane %v89, %v101
    %v103 = vlaneseq
    %v104 = vshrl.u32 %v103, 7
    %v105 = vsub.s32 3, %v104
    %v106 = vrot.slane %v89, %v105
    %v107 = vlaneseq
    %v108 = vshrl.u32 %v107, 7
    %v109 = vsub.s32 4, %v108
    %v110 = vrot.slane %v89, %v109
    %v117 = vunpack.c.l.b16 %v34
    %v118 = vunpack.c.h.b16 %v34
    %v119 = vpack.c.b16 %v117, %v117
    %v120 = vpack.c.b16 %v118, %v118
    %v176 = vunpack.c.l.b16 %v35
    %v177 = vunpack.c.h.b16 %v35
    %v178 = vunpack.c.l.b16 %v36
    %v179 = vunpack.c.h.b16 %v36
    %v180 = vunpack.c.l.b16 %v37
    %v181 = vunpack.c.l.b16 %v38
    %v182 = vunpack.c.h.b16 %v38
    %v183 = vunpack.c.l.b16 %v39
    %v184 = vunpack.c.h.b16 %v39
    %v185 = vunpack.c.l.b16 %v40
    %v186 = vunpack.c.l.b16 %v41
    %v187 = vunpack.c.h.b16 %v41
    %v188 = vunpack.c.l.b16 %v42
    %v189 = vunpack.c.h.b16 %v42
    %v190 = vunpack.c.l.b16 %v43
    %v191 = vunpack.c.l.b16 %v44
    %v192 = vunpack.c.h.b16 %v44
    %v193 = vunpack.c.l.b16 %v45
    %v194 = vunpack.c.h.b16 %v45
    %v195 = vunpack.c.l.b16 %v46
    %v196 = vunpack.c.l.b16 %v47
    %v197 = vunpack.c.h.b16 %v47
    %v198 = vunpack.c.l.b16 %v48
    %v199 = vunpack.c.h.b16 %v48
    %v200 = vunpack.c.l.b16 %v49
    %v201 = vunpack.c.l.b16 %v50
    %v202 = vunpack.c.h.b16 %v50
    %v203 = vunpack.c.l.b16 %v51
    %v204 = vunpack.c.h.b16 %v51
    %v205 = vunpack.c.l.b16 %v52
    %v206 = vunpack.c.l.b16 %v53
    %v207 = vunpack.c.h.b16 %v53
    %v208 = vunpack.c.l.b16 %v54
    %v209 = vunpack.c.h.b16 %v54
    %v210 = vunpack.c.l.b16 %v55
    %v211 = vunpack.c.l.b16 %v56
    %v212 = vunpack.c.h.b16 %v56
    %v213 = vunpack.c.l.b16 %v57
    %v214 = vunpack.c.h.b16 %v57
    %v215 = vunpack.c.l.b16 %v58
    %v216 = vunpack.c.l.b16 %v59
    %v217 = vunpack.c.h.b16 %v59
    %v218 = vunpack.c.l.b16 %v60
    %v219 = vunpack.c.h.b16 %v60
    %v220 = vunpack.c.l.b16 %v61
    %v221 = vunpack.c.l.b16 %v62
    %v222 = vunpack.c.h.b16 %v62
    %v223 = vunpack.c.l.b16 %v63
    %v224 = vunpack.c.h.b16 %v63
    %v225 = vunpack.c.l.b16 %v64
    %v226 = vunpack.c.l.b16 %v65
    %v227 = vunpack.c.h.b16 %v65
    %v228 = vunpack.c.l.b16 %v66
    %v229 = vunpack.c.h.b16 %v66
    %v230 = vunpack.c.l.b16 %v67
    %v231 = vunpack.c.l.b16 %v68
    %v232 = vunpack.c.h.b16 %v68
    %v233 = vunpack.c.l.b16 %v69
    %v234 = vunpack.c.h.b16 %v69
    %v235 = vunpack.c.l.b16 %v70
    %v236 = vunpack.c.l.b16 %v71
    %v237 = vunpack.c.h.b16 %v71
    %v238 = vunpack.c.l.b16 %v72
    %v239 = vunpack.c.h.b16 %v72
    %v240 = vunpack.c.l.b16 %v73
    %v241 = vunpack.c.l.b16 %v74
    %v242 = vunpack.c.h.b16 %v74
    %v243 = vunpack.c.l.b16 %v75
    %v244 = vunpack.c.h.b16 %v75
    %v245 = vunpack.c.l.b16 %v76
    %v246 = vunpack.c.l.b16 %v77
    %v247 = vunpack.c.h.b16 %v77
    %v248 = vunpack.c.l.b16 %v78
    %v249 = vunpack.c.h.b16 %v78
    %v250 = vunpack.c.l.b16 %v79
    %v251 = vunpack.c.l.b16 %v80
    %v252 = vunpack.c.h.b16 %v80
    %v253 = vunpack.c.l.b16 %v81
    %v254 = vunpack.c.h.b16 %v81
    %v255 = vunpack.c.l.b16 %v82
    %v256 = vunpack.c.l.b16 %v83
    %v257 = vunpack.c.h.b16 %v83
    %v258 = vunpack.c.l.b16 %v84
    %v259 = vunpack.c.h.b16 %v84
    %v260 = vunpack.c.l.b16 %v85
    %v261 = vunpack.c.l.b16 %v86
    %v262 = vunpack.c.h.b16 %v86
    %v263 = vunpack.c.l.b16 %v87
    %v264 = vunpack.c.h.b16 %v87
    %v265 = vunpack.c.l.b16 %v88
    %v266 = vpack.c.b16 %v181, %v176
    %v267 = vpack.c.b16 %v182, %v177
    %v268 = vpack.c.b16 %v183, %v178
    %v269 = vpack.c.b16 %v184, %v179
    %v270 = vpack.c.b16 %v185, %v180
    %v271 = vpack.c.b16 %v191, %v186
    %v272 = vpack.c.b16 %v192, %v187
    %v273 = vpack.c.b16 %v193, %v188
    %v274 = vpack.c.b16 %v194, %v189
    %v275 = vpack.c.b16 %v195, %v190
    %v276 = vpack.c.b16 %v201, %v196
    %v277 = vpack.c.b16 %v202, %v197
    %v278 = vpack.c.b16 %v203, %v198
    %v279 = vpack.c.b16 %v204, %v199
    %v280 = vpack.c.b16 %v205, %v200
    %v281 = vpack.c.b16 %v211, %v206
    %v282 = vpack.c.b16 %v212, %v207
    %v283 = vpack.c.b16 %v213, %v208
    %v284 = vpack.c.b16 %v214, %v209
    %v285 = vpack.c.b16 %v215, %v210
    %v286 = vpack.c.b16 %v221, %v216
    %v287 = vpack.c.b16 %v222, %v217
    %v288 = vpack.c.b16 %v223, %v218
    %v289 = vpack.c.b16 %v224, %v219
    %v290 = vpack.c.b16 %v225, %v220
    %v291 = vpack.c.b16 %v231, %v226
    %v292 = vpack.c.b16 %v232, %v227
    %v293 = vpack.c.b16 %v233, %v228
    %v294 = vpack.c.b16 %v234, %v229
    %v295 = vpack.c.b16 %v235, %v230
    %v296 = vpack.c.b16 %v241, %v236
    %v297 = vpack.c.b16 %v242, %v237
    %v298 = vpack.c.b16 %v243, %v238
    %v299 = vpack.c.b16 %v244, %v239
    %v300 = vpack.c.b16 %v245, %v240
    %v301 = vpack.c.b16 %v251, %v246
    %v302 = vpack.c.b16 %v252, %v247
    %v303 = vpack.c.b16 %v253, %v248
    %v304 = vpack.c.b16 %v254, %v249
    %v305 = vpack.c.b16 %v255, %v250
    %v306 = vpack.c.b16 %v261, %v256
    %v307 = vpack.c.b16 %v262, %v257
    %v308 = vpack.c.b16 %v263, %v258
    %v309 = vpack.c.b16 %v264, %v259
    %v310 = vpack.c.b16 %v265, %v260
    %vm356 = vcmask 130048
    %v358 = vsel %vm356, %v120, 0
    %360 = vmatprep.subr.bf16.mxu0 %v302
    %361 = vmatpush1.bf16.msra.mxu0 %v301
    %362 = vmatprep.subr.bf16.mxu0 %v297
    %363 = vmatpush1.bf16.msra.mxu0 %v296
    %364 = vmatprep.subr.bf16.mxu0 %v292
    %365 = vmatpush1.bf16.msra.mxu0 %v291
    %366 = vmatprep.subr.bf16.mxu0 %v287
    %367 = vmatpush1.bf16.msra.mxu0 %v286
    %368 = vmatprep.subr.bf16.mxu0 %v282
    %369 = vmatpush1.bf16.msra.mxu0 %v281
    %370 = vmatprep.subr.bf16.mxu0 %v277
    %371 = vmatpush1.bf16.msra.mxu0 %v276
    %372 = vmatprep.subr.bf16.mxu0 %v272
    %373 = vmatpush1.bf16.msra.mxu0 %v271
    %374 = vmatprep.subr.bf16.mxu0 %v267
    %375 = vmatpush1.bf16.msra.mxu0 %v266
    %376 = vmatprep.subr.bf16.mxu0 0
    %377 = vmatpush2.bf16.msra.mxu0 0
    %378 = vmatprep.subr.bf16.mxu0 0
    %379 = vmatpush2.bf16.msra.mxu0 0
    %380 = vmatprep.subr.bf16.mxu0 0
    %381 = vmatpush2.bf16.msra.mxu0 0
    %382 = vmatprep.subr.bf16.mxu0 0
    %383 = vmatpush2.bf16.msra.mxu0 0
    %384 = vmatprep.subr.bf16.mxu0 0
    %385 = vmatpush2.bf16.msra.mxu0 0
    %386 = vmatprep.subr.bf16.mxu0 0
    %387 = vmatpush2.bf16.msra.mxu0 0
    %388 = vmatprep.subr.bf16.mxu0 0
    %389 = vmatpush2.bf16.msra.mxu0 0
    %390 = vmatprep.subr.bf16.mxu0 %v307
    %391 = vmatpush2.bf16.msra.mxu0 %v306
    %392 = vmatprep.mubr.bf16.mxu0 %v358
    %393 = vmatmul.mubr.bf16.gmra.mxu0 %v119
    %v394 = vpop.f32.mrf.mxu0
    %v395 = vadd.f32 %v94, %v394
    %v396 = vpop.f32.mrf.mxu0
    %v397 = vadd.f32 %v98, %v396
    %v398 = vpop.f32.mrf.mxu0
    %v399 = vpop.f32.mrf.mxu0
    %400 = vdwg.mxu0
    %401 = vmatprep.subr.bf16.mxu0 %v304
    %402 = vmatpush1.bf16.msra.mxu0 %v303
    %403 = vmatprep.subr.bf16.mxu0 %v299
    %404 = vmatpush1.bf16.msra.mxu0 %v298
    %405 = vmatprep.subr.bf16.mxu0 %v294
    %406 = vmatpush1.bf16.msra.mxu0 %v293
    %407 = vmatprep.subr.bf16.mxu0 %v289
    %408 = vmatpush1.bf16.msra.mxu0 %v288
    %409 = vmatprep.subr.bf16.mxu0 %v284
    %410 = vmatpush1.bf16.msra.mxu0 %v283
    %411 = vmatprep.subr.bf16.mxu0 %v279
    %412 = vmatpush1.bf16.msra.mxu0 %v278
    %413 = vmatprep.subr.bf16.mxu0 %v274
    %414 = vmatpush1.bf16.msra.mxu0 %v273
    %415 = vmatprep.subr.bf16.mxu0 %v269
    %416 = vmatpush1.bf16.msra.mxu0 %v268
    %417 = vmatprep.subr.bf16.mxu0 0
    %418 = vmatpush2.bf16.msra.mxu0 0
    %419 = vmatprep.subr.bf16.mxu0 0
    %420 = vmatpush2.bf16.msra.mxu0 0
    %421 = vmatprep.subr.bf16.mxu0 0
    %422 = vmatpush2.bf16.msra.mxu0 0
    %423 = vmatprep.subr.bf16.mxu0 0
    %424 = vmatpush2.bf16.msra.mxu0 0
    %425 = vmatprep.subr.bf16.mxu0 0
    %426 = vmatpush2.bf16.msra.mxu0 0
    %427 = vmatprep.subr.bf16.mxu0 0
    %428 = vmatpush2.bf16.msra.mxu0 0
    %429 = vmatprep.subr.bf16.mxu0 0
    %430 = vmatpush2.bf16.msra.mxu0 0
    %431 = vmatprep.subr.bf16.mxu0 %v309
    %432 = vmatpush2.bf16.msra.mxu0 %v308
    %433 = vmatprep.mubr.bf16.mxu0 %v358
    %434 = vmatmul.mubr.bf16.gmra.mxu0 %v119
    %v435 = vpop.f32.mrf.mxu0
    %v436 = vadd.f32 %v102, %v435
    %v437 = vpop.f32.mrf.mxu0
    %v438 = vadd.f32 %v106, %v437
    %v439 = vpop.f32.mrf.mxu0
    %v440 = vpop.f32.mrf.mxu0
    %441 = vdwg.mxu0
    %442 = vmatprep.subr.bf16.mxu0 0
    %443 = vmatpush1.bf16.msra.mxu0 %v305
    %444 = vmatprep.subr.bf16.mxu0 0
    %445 = vmatpush1.bf16.msra.mxu0 %v300
    %446 = vmatprep.subr.bf16.mxu0 0
    %447 = vmatpush1.bf16.msra.mxu0 %v295
    %448 = vmatprep.subr.bf16.mxu0 0
    %449 = vmatpush1.bf16.msra.mxu0 %v290
    %450 = vmatprep.subr.bf16.mxu0 0
    %451 = vmatpush1.bf16.msra.mxu0 %v285
    %452 = vmatprep.subr.bf16.mxu0 0
    %453 = vmatpush1.bf16.msra.mxu0 %v280
    %454 = vmatprep.subr.bf16.mxu0 0
    %455 = vmatpush1.bf16.msra.mxu0 %v275
    %456 = vmatprep.subr.bf16.mxu0 0
    %457 = vmatpush1.bf16.msra.mxu0 %v270
    %458 = vmatprep.subr.bf16.mxu0 0
    %459 = vmatpush2.bf16.msra.mxu0 0
    %460 = vmatprep.subr.bf16.mxu0 0
    %461 = vmatpush2.bf16.msra.mxu0 0
    %462 = vmatprep.subr.bf16.mxu0 0
    %463 = vmatpush2.bf16.msra.mxu0 0
    %464 = vmatprep.subr.bf16.mxu0 0
    %465 = vmatpush2.bf16.msra.mxu0 0
    %466 = vmatprep.subr.bf16.mxu0 0
    %467 = vmatpush2.bf16.msra.mxu0 0
    %468 = vmatprep.subr.bf16.mxu0 0
    %469 = vmatpush2.bf16.msra.mxu0 0
    %470 = vmatprep.subr.bf16.mxu0 0
    %471 = vmatpush2.bf16.msra.mxu0 0
    %472 = vmatprep.subr.bf16.mxu0 0
    %473 = vmatpush2.bf16.msra.mxu0 %v310
    %474 = vmatprep.mubr.bf16.mxu0 %v358
    %475 = vmatmul.mubr.bf16.gmra.mxu0 %v119
    %v476 = vpop.f32.mrf.mxu0
    %v477 = vadd.f32 %v110, %v476
    %v478 = vpop.f32.mrf.mxu0
    %v479 = vpop.f32.mrf.mxu0
    %v480 = vpop.f32.mrf.mxu0
    %481 = vdwg.mxu0
    %v482 = vmax.f32 %v395, 0.0
    %v483 = vmax.f32 %v397, 0.0
    %v484 = vmax.f32 %v436, 0.0
    %v485 = vmax.f32 %v438, 0.0
    %v486 = vmax.f32 %v477, 0.0
    %v487 = vpack.c.bf16 %v482, %v482
    %v488 = vpack.c.bf16 %v483, %v483
    %v489 = vpack.c.bf16 %v484, %v484
    %v490 = vpack.c.bf16 %v485, %v485
    %v491 = vpack.c.bf16 %v486, %v486
    %v492 = vld [vmem:[%s3] sm:$0xff]
    %v493 = vld [vmem:[%s3 + $0x8] sm:$0xf]
    %v494 = vld [vmem:[%s3 + $0xc] sm:$0xff]
    %v495 = vld [vmem:[%s3 + $0x14] sm:$0xf]
    %v496 = vld [vmem:[%s3 + $0x18] sm:$0xff]
    %v497 = vld [vmem:[%s3 + $0x20] sm:$0xf]
    %v498 = vld [vmem:[%s3 + $0x24] sm:$0xff]
    %v499 = vld [vmem:[%s3 + $0x2c] sm:$0xf]
    %v500 = vld [vmem:[%s3 + $0x30] sm:$0xff]
    %v501 = vld [vmem:[%s3 + $0x38] sm:$0xf]
    %v502 = vld [vmem:[%s3 + $0x3c] sm:$0xff]
    %v503 = vld [vmem:[%s3 + $0x44] sm:$0xf]
    %v504 = vld [vmem:[%s3 + $0x48] sm:$0xff]
    %v505 = vld [vmem:[%s3 + $0x50] sm:$0xf]
    %v506 = vld [vmem:[%s3 + $0x54] sm:$0xff]
    %v507 = vld [vmem:[%s3 + $0x5c] sm:$0xf]
    %v508 = vld [vmem:[%s3 + $0x60] sm:$0xff]
    %v509 = vld [vmem:[%s3 + $0x68] sm:$0xf]
    %v510 = vld [vmem:[%s3 + $0x6c] sm:$0xff]
    %v511 = vld [vmem:[%s3 + $0x74] sm:$0xf]
    %v512 = vld [vmem:[%s3 + $0x78] sm:$0xff]
    %v513 = vld [vmem:[%s3 + $0x80] sm:$0xf]
    %v514 = vld [vmem:[%s3 + $0x84] sm:$0xff]
    %v515 = vld [vmem:[%s3 + $0x8c] sm:$0xf]
    %v516 = vld [vmem:[%s3 + $0x90] sm:$0xff]
    %v517 = vld [vmem:[%s3 + $0x98] sm:$0xf]
    %v518 = vld [vmem:[%s3 + $0x9c] sm:$0xff]
    %v519 = vld [vmem:[%s3 + $0xa4] sm:$0xf]
    %v520 = vld [vmem:[%s3 + $0xa8] sm:$0xff]
    %v521 = vld [vmem:[%s3 + $0xb0] sm:$0xf]
    %v522 = vld [vmem:[%s3 + $0xb4] sm:$0xff]
    %v523 = vld [vmem:[%s3 + $0xbc] sm:$0xf]
    %v524 = vld [vmem:[%s3 + $0xc0] sm:$0xff]
    %v525 = vld [vmem:[%s3 + $0xc8] sm:$0xf]
    %v526 = vld [vmem:[%s3 + $0xcc] sm:$0xff]
    %v527 = vld [vmem:[%s3 + $0xd4] sm:$0xf]
    %v528 = vld [vmem:[%s3 + $0xd8] sm:$0xff]
    %v529 = vld [vmem:[%s3 + $0xe0] sm:$0xf]
    %v530 = vld [vmem:[%s3 + $0xe4] sm:$0xff]
    %v531 = vld [vmem:[%s3 + $0xec] sm:$0xf]
    %v532 = vld [vmem:[%s3 + $0xf0] sm:$0xff]
    %v533 = vld [vmem:[%s3 + $0xf8] sm:$0xf]
    %v534 = vld [vmem:[%s3 + $0xfc] sm:$0xff]
    %v535 = vld [vmem:[%s3 + $0x104] sm:$0xf]
    %v536 = vld [vmem:[%s3 + $0x108] sm:$0xff]
    %v537 = vld [vmem:[%s3 + $0x110] sm:$0xf]
    %v538 = vld [vmem:[%s3 + $0x114] sm:$0xff]
    %v539 = vld [vmem:[%s3 + $0x11c] sm:$0xf]
    %v540 = vld [vmem:[%s3 + $0x120] sm:$0xff]
    %v541 = vld [vmem:[%s3 + $0x128] sm:$0xf]
    %v542 = vld [vmem:[%s3 + $0x12c] sm:$0xff]
    %v543 = vld [vmem:[%s3 + $0x134] sm:$0xf]
    %v544 = vld [vmem:[%s3 + $0x138] sm:$0xff]
    %v545 = vld [vmem:[%s3 + $0x140] sm:$0xf]
    %v546 = vld [vmem:[%s3 + $0x144] sm:$0xff]
    %v547 = vld [vmem:[%s3 + $0x14c] sm:$0xf]
    %v548 = vld [vmem:[%s3 + $0x150] sm:$0xff]
    %v549 = vld [vmem:[%s3 + $0x158] sm:$0xf]
    %v550 = vld [vmem:[%s3 + $0x15c] sm:$0xff]
    %v551 = vld [vmem:[%s3 + $0x164] sm:$0xf]
    %v552 = vld [vmem:[%s3 + $0x168] sm:$0xff]
    %v553 = vld [vmem:[%s3 + $0x170] sm:$0xf]
    %v554 = vld [vmem:[%s3 + $0x174] sm:$0xff]
    %v555 = vld [vmem:[%s3 + $0x17c] sm:$0xf]
    %v556 = vld [vmem:[%s3 + $0x180] sm:$0xff]
    %v557 = vld [vmem:[%s3 + $0x188] sm:$0xf]
    %v558 = vld [vmem:[%s3 + $0x18c] sm:$0xff]
    %v559 = vld [vmem:[%s3 + $0x194] sm:$0xf]
    %v560 = vld [vmem:[%s3 + $0x198] sm:$0xff]
    %v561 = vld [vmem:[%s3 + $0x1a0] sm:$0xf]
    %v562 = vld [vmem:[%s3 + $0x1a4] sm:$0xff]
    %v563 = vld [vmem:[%s3 + $0x1ac] sm:$0xf]
    %v564 = vld [vmem:[%s3 + $0x1b0] sm:$0xff]
    %v565 = vld [vmem:[%s3 + $0x1b8] sm:$0xf]
    %v566 = vld [vmem:[%s3 + $0x1bc] sm:$0xff]
    %v567 = vld [vmem:[%s3 + $0x1c4] sm:$0xf]
    %v568 = vld [vmem:[%s3 + $0x1c8] sm:$0xff]
    %v569 = vld [vmem:[%s3 + $0x1d0] sm:$0xf]
    %v570 = vld [vmem:[%s3 + $0x1d4] sm:$0xff]
    %v571 = vld [vmem:[%s3 + $0x1dc] sm:$0xf]
    %v572 = vld [vmem:[%s3 + $0x1e0] sm:$0xff]
    %v573 = vld [vmem:[%s3 + $0x1e8] sm:$0xf]
    %v574 = vld [vmem:[%s3 + $0x1ec] sm:$0xff]
    %v575 = vld [vmem:[%s3 + $0x1f4] sm:$0xf]
    %v576 = vld [vmem:[%s3 + $0x1f8] sm:$0xff]
    %v577 = vld [vmem:[%s3 + $0x200] sm:$0xf]
    %v578 = vld [vmem:[%s3 + $0x204] sm:$0xff]
    %v579 = vld [vmem:[%s3 + $0x20c] sm:$0xf]
    %v580 = vld [vmem:[%s3 + $0x210] sm:$0xff]
    %v581 = vld [vmem:[%s3 + $0x218] sm:$0xf]
    %v582 = vld [vmem:[%s3 + $0x21c] sm:$0xff]
    %v583 = vld [vmem:[%s3 + $0x224] sm:$0xf]
    %v584 = vld [vmem:[%s3 + $0x228] sm:$0xff]
    %v585 = vld [vmem:[%s3 + $0x230] sm:$0xf]
    %v586 = vld [vmem:[%s3 + $0x234] sm:$0xff]
    %v587 = vld [vmem:[%s3 + $0x23c] sm:$0xf]
    %v588 = vld [vmem:[%s3 + $0x240] sm:$0xff]
    %v589 = vld [vmem:[%s3 + $0x248] sm:$0xf]
    %v590 = vld [vmem:[%s3 + $0x24c] sm:$0xff]
    %v591 = vld [vmem:[%s3 + $0x254] sm:$0xf]
    %v592 = vld [vmem:[%s3 + $0x258] sm:$0xff]
    %v593 = vld [vmem:[%s3 + $0x260] sm:$0xf]
    %v594 = vld [vmem:[%s3 + $0x264] sm:$0xff]
    %v595 = vld [vmem:[%s3 + $0x26c] sm:$0xf]
    %v596 = vld [vmem:[%s3 + $0x270] sm:$0xff]
    %v597 = vld [vmem:[%s3 + $0x278] sm:$0xf]
    %v598 = vld [vmem:[%s3 + $0x27c] sm:$0xff]
    %v599 = vld [vmem:[%s3 + $0x284] sm:$0xf]
    %v600 = vld [vmem:[%s3 + $0x288] sm:$0xff]
    %v601 = vld [vmem:[%s3 + $0x290] sm:$0xf]
    %v602 = vld [vmem:[%s3 + $0x294] sm:$0xff]
    %v603 = vld [vmem:[%s3 + $0x29c] sm:$0xf]
    %v604 = vld [vmem:[%s3 + $0x2a0] sm:$0xff]
    %v605 = vld [vmem:[%s3 + $0x2a8] sm:$0xf]
    %v606 = vld [vmem:[%s3 + $0x2ac] sm:$0xff]
    %v607 = vld [vmem:[%s3 + $0x2b4] sm:$0xf]
    %v608 = vld [vmem:[%s3 + $0x2b8] sm:$0xff]
    %v609 = vld [vmem:[%s3 + $0x2c0] sm:$0xf]
    %v610 = vld [vmem:[%s3 + $0x2c4] sm:$0xff]
    %v611 = vld [vmem:[%s3 + $0x2cc] sm:$0xf]
    %v612 = vld [vmem:[%s3 + $0x2d0] sm:$0xff]
    %v613 = vld [vmem:[%s3 + $0x2d8] sm:$0xf]
    %v614 = vld [vmem:[%s3 + $0x2dc] sm:$0xff]
    %v615 = vld [vmem:[%s3 + $0x2e4] sm:$0xf]
    %v616 = vld [vmem:[%s3 + $0x2e8] sm:$0xff]
    %v617 = vld [vmem:[%s3 + $0x2f0] sm:$0xf]
    %v618 = vld [vmem:[%s3 + $0x2f4] sm:$0xff]
    %v619 = vld [vmem:[%s3 + $0x2fc] sm:$0xf]
    %v620 = vld [vmem:[%s3 + $0x300] sm:$0xff]
    %v621 = vld [vmem:[%s3 + $0x308] sm:$0xf]
    %v622 = vld [vmem:[%s3 + $0x30c] sm:$0xff]
    %v623 = vld [vmem:[%s3 + $0x314] sm:$0xf]
    %v624 = vld [vmem:[%s3 + $0x318] sm:$0xff]
    %v625 = vld [vmem:[%s3 + $0x320] sm:$0xf]
    %v626 = vld [vmem:[%s3 + $0x324] sm:$0xff]
    %v627 = vld [vmem:[%s3 + $0x32c] sm:$0xf]
    %v628 = vld [vmem:[%s3 + $0x330] sm:$0xff]
    %v629 = vld [vmem:[%s3 + $0x338] sm:$0xf]
    %v630 = vld [vmem:[%s3 + $0x33c] sm:$0xff]
    %v631 = vld [vmem:[%s3 + $0x344] sm:$0xf]
    %v632 = vld [vmem:[%s3 + $0x348] sm:$0xff]
    %v633 = vld [vmem:[%s3 + $0x350] sm:$0xf]
    %v634 = vld [vmem:[%s3 + $0x354] sm:$0xff]
    %v635 = vld [vmem:[%s3 + $0x35c] sm:$0xf]
    %v636 = vld [vmem:[%s3 + $0x360] sm:$0xff]
    %v637 = vld [vmem:[%s3 + $0x368] sm:$0xf]
    %v638 = vld [vmem:[%s3 + $0x36c] sm:$0xff]
    %v639 = vld [vmem:[%s3 + $0x374] sm:$0xf]
    %v640 = vld [vmem:[%s3 + $0x378] sm:$0xff]
    %v641 = vld [vmem:[%s3 + $0x380] sm:$0xf]
    %v642 = vld [vmem:[%s3 + $0x384] sm:$0xff]
    %v643 = vld [vmem:[%s3 + $0x38c] sm:$0xf]
    %v644 = vld [vmem:[%s3 + $0x390] sm:$0xff]
    %v645 = vld [vmem:[%s3 + $0x398] sm:$0xf]
    %v646 = vld [vmem:[%s3 + $0x39c] sm:$0xff]
    %v647 = vld [vmem:[%s3 + $0x3a4] sm:$0xf]
    %v648 = vld [vmem:[%s3 + $0x3a8] sm:$0xff]
    %v649 = vld [vmem:[%s3 + $0x3b0] sm:$0xf]
    %v650 = vld [vmem:[%s3 + $0x3b4] sm:$0xff]
    %v651 = vld [vmem:[%s3 + $0x3bc] sm:$0xf]
    %v652 = vld [vmem:[%s4] sm:$0x7]
    %v654 = vlaneseq
    %v655 = vshrl.u32 %v654, 7
    %v656 = vsub.s32 0, %v655
    %v657 = vrot.slane %v652, %v656
    %v658 = vlaneseq
    %v659 = vshrl.u32 %v658, 7
    %v660 = vsub.s32 1, %v659
    %v661 = vrot.slane %v652, %v660
    %v662 = vlaneseq
    %v663 = vshrl.u32 %v662, 7
    %v664 = vsub.s32 2, %v663
    %v665 = vrot.slane %v652, %v664
    %v829 = vunpack.c.l.b16 %v492
    %v830 = vunpack.c.h.b16 %v492
    %v831 = vunpack.c.l.b16 %v493
    %v832 = vunpack.c.l.b16 %v494
    %v833 = vunpack.c.h.b16 %v494
    %v834 = vunpack.c.l.b16 %v495
    %v835 = vunpack.c.l.b16 %v496
    %v836 = vunpack.c.h.b16 %v496
    %v837 = vunpack.c.l.b16 %v497
    %v838 = vunpack.c.l.b16 %v498
    %v839 = vunpack.c.h.b16 %v498
    %v840 = vunpack.c.l.b16 %v499
    %v841 = vunpack.c.l.b16 %v500
    %v842 = vunpack.c.h.b16 %v500
    %v843 = vunpack.c.l.b16 %v501
    %v844 = vunpack.c.l.b16 %v502
    %v845 = vunpack.c.h.b16 %v502
    %v846 = vunpack.c.l.b16 %v503
    %v847 = vunpack.c.l.b16 %v504
    %v848 = vunpack.c.h.b16 %v504
    %v849 = vunpack.c.l.b16 %v505
    %v850 = vunpack.c.l.b16 %v506
    %v851 = vunpack.c.h.b16 %v506
    %v852 = vunpack.c.l.b16 %v507
    %v853 = vunpack.c.l.b16 %v508
    %v854 = vunpack.c.h.b16 %v508
    %v855 = vunpack.c.l.b16 %v509
    %v856 = vunpack.c.l.b16 %v510
    %v857 = vunpack.c.h.b16 %v510
    %v858 = vunpack.c.l.b16 %v511
    %v859 = vunpack.c.l.b16 %v512
    %v860 = vunpack.c.h.b16 %v512
    %v861 = vunpack.c.l.b16 %v513
    %v862 = vunpack.c.l.b16 %v514
    %v863 = vunpack.c.h.b16 %v514
    %v864 = vunpack.c.l.b16 %v515
    %v865 = vunpack.c.l.b16 %v516
    %v866 = vunpack.c.h.b16 %v516
    %v867 = vunpack.c.l.b16 %v517
    %v868 = vunpack.c.l.b16 %v518
    %v869 = vunpack.c.h.b16 %v518
    %v870 = vunpack.c.l.b16 %v519
    %v871 = vunpack.c.l.b16 %v520
    %v872 = vunpack.c.h.b16 %v520
    %v873 = vunpack.c.l.b16 %v521
    %v874 = vunpack.c.l.b16 %v522
    %v875 = vunpack.c.h.b16 %v522
    %v876 = vunpack.c.l.b16 %v523
    %v877 = vunpack.c.l.b16 %v524
    %v878 = vunpack.c.h.b16 %v524
    %v879 = vunpack.c.l.b16 %v525
    %v880 = vunpack.c.l.b16 %v526
    %v881 = vunpack.c.h.b16 %v526
    %v882 = vunpack.c.l.b16 %v527
    %v883 = vunpack.c.l.b16 %v528
    %v884 = vunpack.c.h.b16 %v528
    %v885 = vunpack.c.l.b16 %v529
    %v886 = vunpack.c.l.b16 %v530
    %v887 = vunpack.c.h.b16 %v530
    %v888 = vunpack.c.l.b16 %v531
    %v889 = vunpack.c.l.b16 %v532
    %v890 = vunpack.c.h.b16 %v532
    %v891 = vunpack.c.l.b16 %v533
    %v892 = vunpack.c.l.b16 %v534
    %v893 = vunpack.c.h.b16 %v534
    %v894 = vunpack.c.l.b16 %v535
    %v895 = vunpack.c.l.b16 %v536
    %v896 = vunpack.c.h.b16 %v536
    %v897 = vunpack.c.l.b16 %v537
    %v898 = vunpack.c.l.b16 %v538
    %v899 = vunpack.c.h.b16 %v538
    %v900 = vunpack.c.l.b16 %v539
    %v901 = vunpack.c.l.b16 %v540
    %v902 = vunpack.c.h.b16 %v540
    %v903 = vunpack.c.l.b16 %v541
    %v904 = vunpack.c.l.b16 %v542
    %v905 = vunpack.c.h.b16 %v542
    %v906 = vunpack.c.l.b16 %v543
    %v907 = vunpack.c.l.b16 %v544
    %v908 = vunpack.c.h.b16 %v544
    %v909 = vunpack.c.l.b16 %v545
    %v910 = vunpack.c.l.b16 %v546
    %v911 = vunpack.c.h.b16 %v546
    %v912 = vunpack.c.l.b16 %v547
    %v913 = vunpack.c.l.b16 %v548
    %v914 = vunpack.c.h.b16 %v548
    %v915 = vunpack.c.l.b16 %v549
    %v916 = vunpack.c.l.b16 %v550
    %v917 = vunpack.c.h.b16 %v550
    %v918 = vunpack.c.l.b16 %v551
    %v919 = vunpack.c.l.b16 %v552
    %v920 = vunpack.c.h.b16 %v552
    %v921 = vunpack.c.l.b16 %v553
    %v922 = vunpack.c.l.b16 %v554
    %v923 = vunpack.c.h.b16 %v554
    %v924 = vunpack.c.l.b16 %v555
    %v925 = vunpack.c.l.b16 %v556
    %v926 = vunpack.c.h.b16 %v556
    %v927 = vunpack.c.l.b16 %v557
    %v928 = vunpack.c.l.b16 %v558
    %v929 = vunpack.c.h.b16 %v558
    %v930 = vunpack.c.l.b16 %v559
    %v931 = vunpack.c.l.b16 %v560
    %v932 = vunpack.c.h.b16 %v560
    %v933 = vunpack.c.l.b16 %v561
    %v934 = vunpack.c.l.b16 %v562
    %v935 = vunpack.c.h.b16 %v562
    %v936 = vunpack.c.l.b16 %v563
    %v937 = vunpack.c.l.b16 %v564
    %v938 = vunpack.c.h.b16 %v564
    %v939 = vunpack.c.l.b16 %v565
    %v940 = vunpack.c.l.b16 %v566
    %v941 = vunpack.c.h.b16 %v566
    %v942 = vunpack.c.l.b16 %v567
    %v943 = vunpack.c.l.b16 %v568
    %v944 = vunpack.c.h.b16 %v568
    %v945 = vunpack.c.l.b16 %v569
    %v946 = vunpack.c.l.b16 %v570
    %v947 = vunpack.c.h.b16 %v570
    %v948 = vunpack.c.l.b16 %v571
    %v949 = vunpack.c.l.b16 %v572
    %v950 = vunpack.c.h.b16 %v572
    %v951 = vunpack.c.l.b16 %v573
    %v952 = vunpack.c.l.b16 %v574
    %v953 = vunpack.c.h.b16 %v574
    %v954 = vunpack.c.l.b16 %v575
    %v955 = vunpack.c.l.b16 %v576
    %v956 = vunpack.c.h.b16 %v576
    %v957 = vunpack.c.l.b16 %v577
    %v958 = vunpack.c.l.b16 %v578
    %v959 = vunpack.c.h.b16 %v578
    %v960 = vunpack.c.l.b16 %v579
    %v961 = vunpack.c.l.b16 %v580
    %v962 = vunpack.c.h.b16 %v580
    %v963 = vunpack.c.l.b16 %v581
    %v964 = vunpack.c.l.b16 %v582
    %v965 = vunpack.c.h.b16 %v582
    %v966 = vunpack.c.l.b16 %v583
    %v967 = vunpack.c.l.b16 %v584
    %v968 = vunpack.c.h.b16 %v584
    %v969 = vunpack.c.l.b16 %v585
    %v970 = vunpack.c.l.b16 %v586
    %v971 = vunpack.c.h.b16 %v586
    %v972 = vunpack.c.l.b16 %v587
    %v973 = vunpack.c.l.b16 %v588
    %v974 = vunpack.c.h.b16 %v588
    %v975 = vunpack.c.l.b16 %v589
    %v976 = vunpack.c.l.b16 %v590
    %v977 = vunpack.c.h.b16 %v590
    %v978 = vunpack.c.l.b16 %v591
    %v979 = vunpack.c.l.b16 %v592
    %v980 = vunpack.c.h.b16 %v592
    %v981 = vunpack.c.l.b16 %v593
    %v982 = vunpack.c.l.b16 %v594
    %v983 = vunpack.c.h.b16 %v594
    %v984 = vunpack.c.l.b16 %v595
    %v985 = vunpack.c.l.b16 %v596
    %v986 = vunpack.c.h.b16 %v596
    %v987 = vunpack.c.l.b16 %v597
    %v988 = vunpack.c.l.b16 %v598
    %v989 = vunpack.c.h.b16 %v598
    %v990 = vunpack.c.l.b16 %v599
    %v991 = vunpack.c.l.b16 %v600
    %v992 = vunpack.c.h.b16 %v600
    %v993 = vunpack.c.l.b16 %v601
    %v994 = vunpack.c.l.b16 %v602
    %v995 = vunpack.c.h.b16 %v602
    %v996 = vunpack.c.l.b16 %v603
    %v997 = vunpack.c.l.b16 %v604
    %v998 = vunpack.c.h.b16 %v604
    %v999 = vunpack.c.l.b16 %v605
    %v1000 = vunpack.c.l.b16 %v606
    %v1001 = vunpack.c.h.b16 %v606
    %v1002 = vunpack.c.l.b16 %v607
    %v1003 = vunpack.c.l.b16 %v608
    %v1004 = vunpack.c.h.b16 %v608
    %v1005 = vunpack.c.l.b16 %v609
    %v1006 = vunpack.c.l.b16 %v610
    %v1007 = vunpack.c.h.b16 %v610
    %v1008 = vunpack.c.l.b16 %v611
    %v1009 = vunpack.c.l.b16 %v612
    %v1010 = vunpack.c.h.b16 %v612
    %v1011 = vunpack.c.l.b16 %v613
    %v1012 = vunpack.c.l.b16 %v614
    %v1013 = vunpack.c.h.b16 %v614
    %v1014 = vunpack.c.l.b16 %v615
    %v1015 = vunpack.c.l.b16 %v616
    %v1016 = vunpack.c.h.b16 %v616
    %v1017 = vunpack.c.l.b16 %v617
    %v1018 = vunpack.c.l.b16 %v618
    %v1019 = vunpack.c.h.b16 %v618
    %v1020 = vunpack.c.l.b16 %v619
    %v1021 = vunpack.c.l.b16 %v620
    %v1022 = vunpack.c.h.b16 %v620
    %v1023 = vunpack.c.l.b16 %v621
    %v1024 = vunpack.c.l.b16 %v622
    %v1025 = vunpack.c.h.b16 %v622
    %v1026 = vunpack.c.l.b16 %v623
    %v1027 = vunpack.c.l.b16 %v624
    %v1028 = vunpack.c.h.b16 %v624
    %v1029 = vunpack.c.l.b16 %v625
    %v1030 = vunpack.c.l.b16 %v626
    %v1031 = vunpack.c.h.b16 %v626
    %v1032 = vunpack.c.l.b16 %v627
    %v1033 = vunpack.c.l.b16 %v628
    %v1034 = vunpack.c.h.b16 %v628
    %v1035 = vunpack.c.l.b16 %v629
    %v1036 = vunpack.c.l.b16 %v630
    %v1037 = vunpack.c.h.b16 %v630
    %v1038 = vunpack.c.l.b16 %v631
    %v1039 = vunpack.c.l.b16 %v632
    %v1040 = vunpack.c.h.b16 %v632
    %v1041 = vunpack.c.l.b16 %v633
    %v1042 = vunpack.c.l.b16 %v634
    %v1043 = vunpack.c.h.b16 %v634
    %v1044 = vunpack.c.l.b16 %v635
    %v1045 = vunpack.c.l.b16 %v636
    %v1046 = vunpack.c.h.b16 %v636
    %v1047 = vunpack.c.l.b16 %v637
    %v1048 = vunpack.c.l.b16 %v638
    %v1049 = vunpack.c.h.b16 %v638
    %v1050 = vunpack.c.l.b16 %v639
    %v1051 = vunpack.c.l.b16 %v640
    %v1052 = vunpack.c.h.b16 %v640
    %v1053 = vunpack.c.l.b16 %v641
    %v1054 = vunpack.c.l.b16 %v642
    %v1055 = vunpack.c.h.b16 %v642
    %v1056 = vunpack.c.l.b16 %v643
    %v1057 = vunpack.c.l.b16 %v644
    %v1058 = vunpack.c.h.b16 %v644
    %v1059 = vunpack.c.l.b16 %v645
    %v1060 = vunpack.c.l.b16 %v646
    %v1061 = vunpack.c.h.b16 %v646
    %v1062 = vunpack.c.l.b16 %v647
    %v1063 = vunpack.c.l.b16 %v648
    %v1064 = vunpack.c.h.b16 %v648
    %v1065 = vunpack.c.l.b16 %v649
    %v1066 = vunpack.c.l.b16 %v650
    %v1067 = vunpack.c.h.b16 %v650
    %v1068 = vunpack.c.l.b16 %v651
    %v1069 = vpack.c.b16 %v832, %v829
    %v1070 = vpack.c.b16 %v833, %v830
    %v1071 = vpack.c.b16 %v834, %v831
    %v1072 = vpack.c.b16 %v838, %v835
    %v1073 = vpack.c.b16 %v839, %v836
    %v1074 = vpack.c.b16 %v840, %v837
    %v1075 = vpack.c.b16 %v844, %v841
    %v1076 = vpack.c.b16 %v845, %v842
    %v1077 = vpack.c.b16 %v846, %v843
    %v1078 = vpack.c.b16 %v850, %v847
    %v1079 = vpack.c.b16 %v851, %v848
    %v1080 = vpack.c.b16 %v852, %v849
    %v1081 = vpack.c.b16 %v856, %v853
    %v1082 = vpack.c.b16 %v857, %v854
    %v1083 = vpack.c.b16 %v858, %v855
    %v1084 = vpack.c.b16 %v862, %v859
    %v1085 = vpack.c.b16 %v863, %v860
    %v1086 = vpack.c.b16 %v864, %v861
    %v1087 = vpack.c.b16 %v868, %v865
    %v1088 = vpack.c.b16 %v869, %v866
    %v1089 = vpack.c.b16 %v870, %v867
    %v1090 = vpack.c.b16 %v874, %v871
    %v1091 = vpack.c.b16 %v875, %v872
    %v1092 = vpack.c.b16 %v876, %v873
    %v1093 = vpack.c.b16 %v880, %v877
    %v1094 = vpack.c.b16 %v881, %v878
    %v1095 = vpack.c.b16 %v882, %v879
    %v1096 = vpack.c.b16 %v886, %v883
    %v1097 = vpack.c.b16 %v887, %v884
    %v1098 = vpack.c.b16 %v888, %v885
    %v1099 = vpack.c.b16 %v892, %v889
    %v1100 = vpack.c.b16 %v893, %v890
    %v1101 = vpack.c.b16 %v894, %v891
    %v1102 = vpack.c.b16 %v898, %v895
    %v1103 = vpack.c.b16 %v899, %v896
    %v1104 = vpack.c.b16 %v900, %v897
    %v1105 = vpack.c.b16 %v904, %v901
    %v1106 = vpack.c.b16 %v905, %v902
    %v1107 = vpack.c.b16 %v906, %v903
    %v1108 = vpack.c.b16 %v910, %v907
    %v1109 = vpack.c.b16 %v911, %v908
    %v1110 = vpack.c.b16 %v912, %v909
    %v1111 = vpack.c.b16 %v916, %v913
    %v1112 = vpack.c.b16 %v917, %v914
    %v1113 = vpack.c.b16 %v918, %v915
    %v1114 = vpack.c.b16 %v922, %v919
    %v1115 = vpack.c.b16 %v923, %v920
    %v1116 = vpack.c.b16 %v924, %v921
    %v1117 = vpack.c.b16 %v928, %v925
    %v1118 = vpack.c.b16 %v929, %v926
    %v1119 = vpack.c.b16 %v930, %v927
    %v1120 = vpack.c.b16 %v934, %v931
    %v1121 = vpack.c.b16 %v935, %v932
    %v1122 = vpack.c.b16 %v936, %v933
    %v1123 = vpack.c.b16 %v940, %v937
    %v1124 = vpack.c.b16 %v941, %v938
    %v1125 = vpack.c.b16 %v942, %v939
    %v1126 = vpack.c.b16 %v946, %v943
    %v1127 = vpack.c.b16 %v947, %v944
    %v1128 = vpack.c.b16 %v948, %v945
    %v1129 = vpack.c.b16 %v952, %v949
    %v1130 = vpack.c.b16 %v953, %v950
    %v1131 = vpack.c.b16 %v954, %v951
    %v1132 = vpack.c.b16 %v958, %v955
    %v1133 = vpack.c.b16 %v959, %v956
    %v1134 = vpack.c.b16 %v960, %v957
    %v1135 = vpack.c.b16 %v964, %v961
    %v1136 = vpack.c.b16 %v965, %v962
    %v1137 = vpack.c.b16 %v966, %v963
    %v1138 = vpack.c.b16 %v970, %v967
    %v1139 = vpack.c.b16 %v971, %v968
    %v1140 = vpack.c.b16 %v972, %v969
    %v1141 = vpack.c.b16 %v976, %v973
    %v1142 = vpack.c.b16 %v977, %v974
    %v1143 = vpack.c.b16 %v978, %v975
    %v1144 = vpack.c.b16 %v982, %v979
    %v1145 = vpack.c.b16 %v983, %v980
    %v1146 = vpack.c.b16 %v984, %v981
    %v1147 = vpack.c.b16 %v988, %v985
    %v1148 = vpack.c.b16 %v989, %v986
    %v1149 = vpack.c.b16 %v990, %v987
    %v1150 = vpack.c.b16 %v994, %v991
    %v1151 = vpack.c.b16 %v995, %v992
    %v1152 = vpack.c.b16 %v996, %v993
    %v1153 = vpack.c.b16 %v1000, %v997
    %v1154 = vpack.c.b16 %v1001, %v998
    %v1155 = vpack.c.b16 %v1002, %v999
    %v1156 = vpack.c.b16 %v1006, %v1003
    %v1157 = vpack.c.b16 %v1007, %v1004
    %v1158 = vpack.c.b16 %v1008, %v1005
    %v1159 = vpack.c.b16 %v1012, %v1009
    %v1160 = vpack.c.b16 %v1013, %v1010
    %v1161 = vpack.c.b16 %v1014, %v1011
    %v1162 = vpack.c.b16 %v1018, %v1015
    %v1163 = vpack.c.b16 %v1019, %v1016
    %v1164 = vpack.c.b16 %v1020, %v1017
    %v1165 = vpack.c.b16 %v1024, %v1021
    %v1166 = vpack.c.b16 %v1025, %v1022
    %v1167 = vpack.c.b16 %v1026, %v1023
    %v1168 = vpack.c.b16 %v1030, %v1027
    %v1169 = vpack.c.b16 %v1031, %v1028
    %v1170 = vpack.c.b16 %v1032, %v1029
    %v1171 = vpack.c.b16 %v1036, %v1033
    %v1172 = vpack.c.b16 %v1037, %v1034
    %v1173 = vpack.c.b16 %v1038, %v1035
    %v1174 = vpack.c.b16 %v1042, %v1039
    %v1175 = vpack.c.b16 %v1043, %v1040
    %v1176 = vpack.c.b16 %v1044, %v1041
    %v1177 = vpack.c.b16 %v1048, %v1045
    %v1178 = vpack.c.b16 %v1049, %v1046
    %v1179 = vpack.c.b16 %v1050, %v1047
    %v1180 = vpack.c.b16 %v1054, %v1051
    %v1181 = vpack.c.b16 %v1055, %v1052
    %v1182 = vpack.c.b16 %v1056, %v1053
    %v1183 = vpack.c.b16 %v1060, %v1057
    %v1184 = vpack.c.b16 %v1061, %v1058
    %v1185 = vpack.c.b16 %v1062, %v1059
    %v1186 = vpack.c.b16 %v1066, %v1063
    %v1187 = vpack.c.b16 %v1067, %v1064
    %v1188 = vpack.c.b16 %v1068, %v1065
    %1309 = vmatprep.subr.bf16.mxu0 %v1091
    %1310 = vmatpush1.bf16.msra.mxu0 %v1090
    %1311 = vmatprep.subr.bf16.mxu0 %v1088
    %1312 = vmatpush1.bf16.msra.mxu0 %v1087
    %1313 = vmatprep.subr.bf16.mxu0 %v1085
    %1314 = vmatpush1.bf16.msra.mxu0 %v1084
    %1315 = vmatprep.subr.bf16.mxu0 %v1082
    %1316 = vmatpush1.bf16.msra.mxu0 %v1081
    %1317 = vmatprep.subr.bf16.mxu0 %v1079
    %1318 = vmatpush1.bf16.msra.mxu0 %v1078
    %1319 = vmatprep.subr.bf16.mxu0 %v1076
    %1320 = vmatpush1.bf16.msra.mxu0 %v1075
    %1321 = vmatprep.subr.bf16.mxu0 %v1073
    %1322 = vmatpush1.bf16.msra.mxu0 %v1072
    %1323 = vmatprep.subr.bf16.mxu0 %v1070
    %1324 = vmatpush1.bf16.msra.mxu0 %v1069
    %1325 = vmatprep.subr.bf16.mxu0 %v1115
    %1326 = vmatpush2.bf16.msra.mxu0 %v1114
    %1327 = vmatprep.subr.bf16.mxu0 %v1112
    %1328 = vmatpush2.bf16.msra.mxu0 %v1111
    %1329 = vmatprep.subr.bf16.mxu0 %v1109
    %1330 = vmatpush2.bf16.msra.mxu0 %v1108
    %1331 = vmatprep.subr.bf16.mxu0 %v1106
    %1332 = vmatpush2.bf16.msra.mxu0 %v1105
    %1333 = vmatprep.subr.bf16.mxu0 %v1103
    %1334 = vmatpush2.bf16.msra.mxu0 %v1102
    %1335 = vmatprep.subr.bf16.mxu0 %v1100
    %1336 = vmatpush2.bf16.msra.mxu0 %v1099
    %1337 = vmatprep.subr.bf16.mxu0 %v1097
    %1338 = vmatpush2.bf16.msra.mxu0 %v1096
    %1339 = vmatprep.subr.bf16.mxu0 %v1094
    %1340 = vmatpush2.bf16.msra.mxu0 %v1093
    %1341 = vmatprep.mubr.bf16.mxu0 %v488
    %1342 = vmatmul.mubr.bf16.gmra.mxu0 %v487
    %v1343 = vpop.f32.mrf.mxu0
    %v1344 = vadd.f32 %v657, %v1343
    %v1345 = vpop.f32.mrf.mxu0
    %v1346 = vadd.f32 %v661, %v1345
    %v1347 = vpop.f32.mrf.mxu0
    %v1348 = vpop.f32.mrf.mxu0
    %1349 = vdwg.mxu0
    %1350 = vmatprep.subr.bf16.mxu0 %v1139
    %1351 = vmatpush1.bf16.msra.mxu0 %v1138
    %1352 = vmatprep.subr.bf16.mxu0 %v1136
    %1353 = vmatpush1.bf16.msra.mxu0 %v1135
    %1354 = vmatprep.subr.bf16.mxu0 %v1133
    %1355 = vmatpush1.bf16.msra.mxu0 %v1132
    %1356 = vmatprep.subr.bf16.mxu0 %v1130
    %1357 = vmatpush1.bf16.msra.mxu0 %v1129
    %1358 = vmatprep.subr.bf16.mxu0 %v1127
    %1359 = vmatpush1.bf16.msra.mxu0 %v1126
    %1360 = vmatprep.subr.bf16.mxu0 %v1124
    %1361 = vmatpush1.bf16.msra.mxu0 %v1123
    %1362 = vmatprep.subr.bf16.mxu0 %v1121
    %1363 = vmatpush1.bf16.msra.mxu0 %v1120
    %1364 = vmatprep.subr.bf16.mxu0 %v1118
    %1365 = vmatpush1.bf16.msra.mxu0 %v1117
    %1366 = vmatprep.subr.bf16.mxu0 %v1163
    %1367 = vmatpush2.bf16.msra.mxu0 %v1162
    %1368 = vmatprep.subr.bf16.mxu0 %v1160
    %1369 = vmatpush2.bf16.msra.mxu0 %v1159
    %1370 = vmatprep.subr.bf16.mxu0 %v1157
    %1371 = vmatpush2.bf16.msra.mxu0 %v1156
    %1372 = vmatprep.subr.bf16.mxu0 %v1154
    %1373 = vmatpush2.bf16.msra.mxu0 %v1153
    %1374 = vmatprep.subr.bf16.mxu0 %v1151
    %1375 = vmatpush2.bf16.msra.mxu0 %v1150
    %1376 = vmatprep.subr.bf16.mxu0 %v1148
    %1377 = vmatpush2.bf16.msra.mxu0 %v1147
    %1378 = vmatprep.subr.bf16.mxu0 %v1145
    %1379 = vmatpush2.bf16.msra.mxu0 %v1144
    %1380 = vmatprep.subr.bf16.mxu0 %v1142
    %1381 = vmatpush2.bf16.msra.mxu0 %v1141
    %1382 = vmatprep.mubr.bf16.mxu0 %v490
    %1383 = vmatmul.mubr.bf16.gmra.mxu0 %v489
    %v1384 = vpop.f32.mrf.mxu0
    %v1385 = vadd.f32 %v1344, %v1384
    %v1386 = vpop.f32.mrf.mxu0
    %v1387 = vadd.f32 %v1346, %v1386
    %v1388 = vpop.f32.mrf.mxu0
    %v1389 = vpop.f32.mrf.mxu0
    %1390 = vdwg.mxu0
    %1391 = vmatprep.subr.bf16.mxu0 %v1187
    %1392 = vmatpush1.bf16.msra.mxu0 %v1186
    %1393 = vmatprep.subr.bf16.mxu0 %v1184
    %1394 = vmatpush1.bf16.msra.mxu0 %v1183
    %1395 = vmatprep.subr.bf16.mxu0 %v1181
    %1396 = vmatpush1.bf16.msra.mxu0 %v1180
    %1397 = vmatprep.subr.bf16.mxu0 %v1178
    %1398 = vmatpush1.bf16.msra.mxu0 %v1177
    %1399 = vmatprep.subr.bf16.mxu0 %v1175
    %1400 = vmatpush1.bf16.msra.mxu0 %v1174
    %1401 = vmatprep.subr.bf16.mxu0 %v1172
    %1402 = vmatpush1.bf16.msra.mxu0 %v1171
    %1403 = vmatprep.subr.bf16.mxu0 %v1169
    %1404 = vmatpush1.bf16.msra.mxu0 %v1168
    %1405 = vmatprep.subr.bf16.mxu0 %v1166
    %1406 = vmatpush1.bf16.msra.mxu0 %v1165
    %1407 = vmatprep.subr.bf16.mxu0 0
    %1408 = vmatpush2.bf16.msra.mxu0 0
    %1409 = vmatprep.subr.bf16.mxu0 0
    %1410 = vmatpush2.bf16.msra.mxu0 0
    %1411 = vmatprep.subr.bf16.mxu0 0
    %1412 = vmatpush2.bf16.msra.mxu0 0
    %1413 = vmatprep.subr.bf16.mxu0 0
    %1414 = vmatpush2.bf16.msra.mxu0 0
    %1415 = vmatprep.subr.bf16.mxu0 0
    %1416 = vmatpush2.bf16.msra.mxu0 0
    %1417 = vmatprep.subr.bf16.mxu0 0
    %1418 = vmatpush2.bf16.msra.mxu0 0
    %1419 = vmatprep.subr.bf16.mxu0 0
    %1420 = vmatpush2.bf16.msra.mxu0 0
    %1421 = vmatprep.subr.bf16.mxu0 0
    %1422 = vmatpush2.bf16.msra.mxu0 0
    %1423 = vmatprep.mubr.bf16.mxu0 0
    %1424 = vmatmul.mubr.bf16.gmra.mxu0 %v491
    %v1425 = vpop.f32.mrf.mxu0
    %v1426 = vadd.f32 %v1385, %v1425
    %v1427 = vpop.f32.mrf.mxu0
    %v1428 = vadd.f32 %v1387, %v1427
    %v1429 = vpop.f32.mrf.mxu0
    %v1430 = vpop.f32.mrf.mxu0
    %1431 = vdwg.mxu0
    %1432 = vmatprep.subr.bf16.mxu0 0
    %1433 = vmatpush1.bf16.msra.mxu0 %v1092
    %1434 = vmatprep.subr.bf16.mxu0 0
    %1435 = vmatpush1.bf16.msra.mxu0 %v1089
    %1436 = vmatprep.subr.bf16.mxu0 0
    %1437 = vmatpush1.bf16.msra.mxu0 %v1086
    %1438 = vmatprep.subr.bf16.mxu0 0
    %1439 = vmatpush1.bf16.msra.mxu0 %v1083
    %1440 = vmatprep.subr.bf16.mxu0 0
    %1441 = vmatpush1.bf16.msra.mxu0 %v1080
    %1442 = vmatprep.subr.bf16.mxu0 0
    %1443 = vmatpush1.bf16.msra.mxu0 %v1077
    %1444 = vmatprep.subr.bf16.mxu0 0
    %1445 = vmatpush1.bf16.msra.mxu0 %v1074
    %1446 = vmatprep.subr.bf16.mxu0 0
    %1447 = vmatpush1.bf16.msra.mxu0 %v1071
    %1448 = vmatprep.subr.bf16.mxu0 0
    %1449 = vmatpush2.bf16.msra.mxu0 %v1116
    %1450 = vmatprep.subr.bf16.mxu0 0
    %1451 = vmatpush2.bf16.msra.mxu0 %v1113
    %1452 = vmatprep.subr.bf16.mxu0 0
    %1453 = vmatpush2.bf16.msra.mxu0 %v1110
    %1454 = vmatprep.subr.bf16.mxu0 0
    %1455 = vmatpush2.bf16.msra.mxu0 %v1107
    %1456 = vmatprep.subr.bf16.mxu0 0
    %1457 = vmatpush2.bf16.msra.mxu0 %v1104
    %1458 = vmatprep.subr.bf16.mxu0 0
    %1459 = vmatpush2.bf16.msra.mxu0 %v1101
    %1460 = vmatprep.subr.bf16.mxu0 0
    %1461 = vmatpush2.bf16.msra.mxu0 %v1098
    %1462 = vmatprep.subr.bf16.mxu0 0
    %1463 = vmatpush2.bf16.msra.mxu0 %v1095
    %1464 = vmatprep.mubr.bf16.mxu0 %v488
    %1465 = vmatmul.mubr.bf16.gmra.mxu0 %v487
    %v1466 = vpop.f32.mrf.mxu0
    %v1467 = vadd.f32 %v665, %v1466
    %v1468 = vpop.f32.mrf.mxu0
    %v1469 = vpop.f32.mrf.mxu0
    %v1470 = vpop.f32.mrf.mxu0
    %1471 = vdwg.mxu0
    %1472 = vmatprep.subr.bf16.mxu0 0
    %1473 = vmatpush1.bf16.msra.mxu0 %v1140
    %1474 = vmatprep.subr.bf16.mxu0 0
    %1475 = vmatpush1.bf16.msra.mxu0 %v1137
    %1476 = vmatprep.subr.bf16.mxu0 0
    %1477 = vmatpush1.bf16.msra.mxu0 %v1134
    %1478 = vmatprep.subr.bf16.mxu0 0
    %1479 = vmatpush1.bf16.msra.mxu0 %v1131
    %1480 = vmatprep.subr.bf16.mxu0 0
    %1481 = vmatpush1.bf16.msra.mxu0 %v1128
    %1482 = vmatprep.subr.bf16.mxu0 0
    %1483 = vmatpush1.bf16.msra.mxu0 %v1125
    %1484 = vmatprep.subr.bf16.mxu0 0
    %1485 = vmatpush1.bf16.msra.mxu0 %v1122
    %1486 = vmatprep.subr.bf16.mxu0 0
    %1487 = vmatpush1.bf16.msra.mxu0 %v1119
    %1488 = vmatprep.subr.bf16.mxu0 0
    %1489 = vmatpush2.bf16.msra.mxu0 %v1164
    %1490 = vmatprep.subr.bf16.mxu0 0
    %1491 = vmatpush2.bf16.msra.mxu0 %v1161
    %1492 = vmatprep.subr.bf16.mxu0 0
    %1493 = vmatpush2.bf16.msra.mxu0 %v1158
    %1494 = vmatprep.subr.bf16.mxu0 0
    %1495 = vmatpush2.bf16.msra.mxu0 %v1155
    %1496 = vmatprep.subr.bf16.mxu0 0
    %1497 = vmatpush2.bf16.msra.mxu0 %v1152
    %1498 = vmatprep.subr.bf16.mxu0 0
    %1499 = vmatpush2.bf16.msra.mxu0 %v1149
    %1500 = vmatprep.subr.bf16.mxu0 0
    %1501 = vmatpush2.bf16.msra.mxu0 %v1146
    %1502 = vmatprep.subr.bf16.mxu0 0
    %1503 = vmatpush2.bf16.msra.mxu0 %v1143
    %1504 = vmatprep.mubr.bf16.mxu0 %v490
    %1505 = vmatmul.mubr.bf16.gmra.mxu0 %v489
    %v1506 = vpop.f32.mrf.mxu0
    %v1507 = vadd.f32 %v1467, %v1506
    %v1508 = vpop.f32.mrf.mxu0
    %v1509 = vpop.f32.mrf.mxu0
    %v1510 = vpop.f32.mrf.mxu0
    %1511 = vdwg.mxu0
    %1512 = vmatprep.subr.bf16.mxu0 0
    %1513 = vmatpush1.bf16.msra.mxu0 %v1188
    %1514 = vmatprep.subr.bf16.mxu0 0
    %1515 = vmatpush1.bf16.msra.mxu0 %v1185
    %1516 = vmatprep.subr.bf16.mxu0 0
    %1517 = vmatpush1.bf16.msra.mxu0 %v1182
    %1518 = vmatprep.subr.bf16.mxu0 0
    %1519 = vmatpush1.bf16.msra.mxu0 %v1179
    %1520 = vmatprep.subr.bf16.mxu0 0
    %1521 = vmatpush1.bf16.msra.mxu0 %v1176
    %1522 = vmatprep.subr.bf16.mxu0 0
    %1523 = vmatpush1.bf16.msra.mxu0 %v1173
    %1524 = vmatprep.subr.bf16.mxu0 0
    %1525 = vmatpush1.bf16.msra.mxu0 %v1170
    %1526 = vmatprep.subr.bf16.mxu0 0
    %1527 = vmatpush1.bf16.msra.mxu0 %v1167
    %1528 = vmatprep.subr.bf16.mxu0 0
    %1529 = vmatpush2.bf16.msra.mxu0 0
    %1530 = vmatprep.subr.bf16.mxu0 0
    %1531 = vmatpush2.bf16.msra.mxu0 0
    %1532 = vmatprep.subr.bf16.mxu0 0
    %1533 = vmatpush2.bf16.msra.mxu0 0
    %1534 = vmatprep.subr.bf16.mxu0 0
    %1535 = vmatpush2.bf16.msra.mxu0 0
    %1536 = vmatprep.subr.bf16.mxu0 0
    %1537 = vmatpush2.bf16.msra.mxu0 0
    %1538 = vmatprep.subr.bf16.mxu0 0
    %1539 = vmatpush2.bf16.msra.mxu0 0
    %1540 = vmatprep.subr.bf16.mxu0 0
    %1541 = vmatpush2.bf16.msra.mxu0 0
    %1542 = vmatprep.subr.bf16.mxu0 0
    %1543 = vmatpush2.bf16.msra.mxu0 0
    %1544 = vmatprep.mubr.bf16.mxu0 0
    %1545 = vmatmul.mubr.bf16.gmra.mxu0 %v491
    %v1546 = vpop.f32.mrf.mxu0
    %v1547 = vadd.f32 %v1507, %v1546
    %v1548 = vpop.f32.mrf.mxu0
    %v1549 = vpop.f32.mrf.mxu0
    %v1550 = vpop.f32.mrf.mxu0
    %1551 = vdwg.mxu0
    %v1552 = vmax.f32 %v1426, 0.0
    %v1553 = vmax.f32 %v1428, 0.0
    %v1554 = vmax.f32 %v1547, 0.0
    %v1555 = vpack.c.bf16 %v1552, %v1552
    %v1556 = vpack.c.bf16 %v1553, %v1553
    %v1557 = vpack.c.bf16 %v1554, %v1554
    %v1558 = vld [vmem:[%s5] sm:$0xf]
    %v1559 = vld [vmem:[%s5 + $0x4] sm:$0xf]
    %v1560 = vld [vmem:[%s5 + $0x8] sm:$0xf]
    %v1561 = vld [vmem:[%s5 + $0xc] sm:$0xf]
    %v1562 = vld [vmem:[%s5 + $0x10] sm:$0xf]
    %v1563 = vld [vmem:[%s5 + $0x14] sm:$0xf]
    %v1564 = vld [vmem:[%s5 + $0x18] sm:$0xf]
    %v1565 = vld [vmem:[%s5 + $0x1c] sm:$0xf]
    %v1566 = vld [vmem:[%s5 + $0x20] sm:$0xf]
    %v1567 = vld [vmem:[%s5 + $0x24] sm:$0xf]
    %v1568 = vld [vmem:[%s5 + $0x28] sm:$0xf]
    %v1569 = vld [vmem:[%s5 + $0x2c] sm:$0xf]
    %v1570 = vld [vmem:[%s5 + $0x30] sm:$0xf]
    %v1571 = vld [vmem:[%s5 + $0x34] sm:$0xf]
    %v1572 = vld [vmem:[%s5 + $0x38] sm:$0xf]
    %v1573 = vld [vmem:[%s5 + $0x3c] sm:$0xf]
    %v1574 = vld [vmem:[%s5 + $0x40] sm:$0xf]
    %v1575 = vld [vmem:[%s5 + $0x44] sm:$0xf]
    %v1576 = vld [vmem:[%s5 + $0x48] sm:$0xf]
    %v1577 = vld [vmem:[%s5 + $0x4c] sm:$0xf]
    %v1578 = vld [vmem:[%s5 + $0x50] sm:$0xf]
    %v1579 = vld [vmem:[%s5 + $0x54] sm:$0xf]
    %v1580 = vld [vmem:[%s5 + $0x58] sm:$0xf]
    %v1581 = vld [vmem:[%s5 + $0x5c] sm:$0xf]
    %v1582 = vld [vmem:[%s5 + $0x60] sm:$0xf]
    %v1583 = vld [vmem:[%s5 + $0x64] sm:$0xf]
    %v1584 = vld [vmem:[%s5 + $0x68] sm:$0xf]
    %v1585 = vld [vmem:[%s5 + $0x6c] sm:$0xf]
    %v1586 = vld [vmem:[%s5 + $0x70] sm:$0xf]
    %v1587 = vld [vmem:[%s5 + $0x74] sm:$0xf]
    %v1588 = vld [vmem:[%s5 + $0x78] sm:$0xf]
    %v1589 = vld [vmem:[%s5 + $0x7c] sm:$0xf]
    %v1590 = vld [vmem:[%s5 + $0x80] sm:$0xf]
    %v1591 = vld [vmem:[%s5 + $0x84] sm:$0xf]
    %v1592 = vld [vmem:[%s5 + $0x88] sm:$0xf]
    %v1593 = vld [vmem:[%s5 + $0x8c] sm:$0xf]
    %v1594 = vld [vmem:[%s5 + $0x90] sm:$0xf]
    %v1595 = vld [vmem:[%s5 + $0x94] sm:$0xf]
    %v1596 = vld [vmem:[%s5 + $0x98] sm:$0xf]
    %v1597 = vld [vmem:[%s5 + $0x9c] sm:$0xf]
    %v1598 = vld [vmem:[%s6] sm:$0x1]
    %v1600 = vlaneseq
    %v1601 = vshrl.u32 %v1600, 7
    %v1602 = vsub.s32 0, %v1601
    %v1603 = vrot.slane %v1598, %v1602
    %v1645 = vunpack.c.l.b16 %v1558
    %v1646 = vunpack.c.l.b16 %v1559
    %v1647 = vunpack.c.l.b16 %v1560
    %v1648 = vunpack.c.l.b16 %v1561
    %v1649 = vunpack.c.l.b16 %v1562
    %v1650 = vunpack.c.l.b16 %v1563
    %v1651 = vunpack.c.l.b16 %v1564
    %v1652 = vunpack.c.l.b16 %v1565
    %v1653 = vunpack.c.l.b16 %v1566
    %v1654 = vunpack.c.l.b16 %v1567
    %v1655 = vunpack.c.l.b16 %v1568
    %v1656 = vunpack.c.l.b16 %v1569
    %v1657 = vunpack.c.l.b16 %v1570
    %v1658 = vunpack.c.l.b16 %v1571
    %v1659 = vunpack.c.l.b16 %v1572
    %v1660 = vunpack.c.l.b16 %v1573
    %v1661 = vunpack.c.l.b16 %v1574
    %v1662 = vunpack.c.l.b16 %v1575
    %v1663 = vunpack.c.l.b16 %v1576
    %v1664 = vunpack.c.l.b16 %v1577
    %v1665 = vunpack.c.l.b16 %v1578
    %v1666 = vunpack.c.l.b16 %v1579
    %v1667 = vunpack.c.l.b16 %v1580
    %v1668 = vunpack.c.l.b16 %v1581
    %v1669 = vunpack.c.l.b16 %v1582
    %v1670 = vunpack.c.l.b16 %v1583
    %v1671 = vunpack.c.l.b16 %v1584
    %v1672 = vunpack.c.l.b16 %v1585
    %v1673 = vunpack.c.l.b16 %v1586
    %v1674 = vunpack.c.l.b16 %v1587
    %v1675 = vunpack.c.l.b16 %v1588
    %v1676 = vunpack.c.l.b16 %v1589
    %v1677 = vunpack.c.l.b16 %v1590
    %v1678 = vunpack.c.l.b16 %v1591
    %v1679 = vunpack.c.l.b16 %v1592
    %v1680 = vunpack.c.l.b16 %v1593
    %v1681 = vunpack.c.l.b16 %v1594
    %v1682 = vunpack.c.l.b16 %v1595
    %v1683 = vunpack.c.l.b16 %v1596
    %v1684 = vunpack.c.l.b16 %v1597
    %v1685 = vpack.c.b16 %v1646, %v1645
    %v1686 = vpack.c.b16 %v1648, %v1647
    %v1687 = vpack.c.b16 %v1650, %v1649
    %v1688 = vpack.c.b16 %v1652, %v1651
    %v1689 = vpack.c.b16 %v1654, %v1653
    %v1690 = vpack.c.b16 %v1656, %v1655
    %v1691 = vpack.c.b16 %v1658, %v1657
    %v1692 = vpack.c.b16 %v1660, %v1659
    %v1693 = vpack.c.b16 %v1662, %v1661
    %v1694 = vpack.c.b16 %v1664, %v1663
    %v1695 = vpack.c.b16 %v1666, %v1665
    %v1696 = vpack.c.b16 %v1668, %v1667
    %v1697 = vpack.c.b16 %v1670, %v1669
    %v1698 = vpack.c.b16 %v1672, %v1671
    %v1699 = vpack.c.b16 %v1674, %v1673
    %v1700 = vpack.c.b16 %v1676, %v1675
    %v1701 = vpack.c.b16 %v1678, %v1677
    %v1702 = vpack.c.b16 %v1680, %v1679
    %v1703 = vpack.c.b16 %v1682, %v1681
    %v1704 = vpack.c.b16 %v1684, %v1683
    %vm1725 = vcmask 523264
    %v1727 = vsel %vm1725, %v1557, 0
    %1729 = vmatprep.subr.bf16.mxu0 0
    %1730 = vmatpush1.bf16.msra.mxu0 %v1692
    %1731 = vmatprep.subr.bf16.mxu0 0
    %1732 = vmatpush1.bf16.msra.mxu0 %v1691
    %1733 = vmatprep.subr.bf16.mxu0 0
    %1734 = vmatpush1.bf16.msra.mxu0 %v1690
    %1735 = vmatprep.subr.bf16.mxu0 0
    %1736 = vmatpush1.bf16.msra.mxu0 %v1689
    %1737 = vmatprep.subr.bf16.mxu0 0
    %1738 = vmatpush1.bf16.msra.mxu0 %v1688
    %1739 = vmatprep.subr.bf16.mxu0 0
    %1740 = vmatpush1.bf16.msra.mxu0 %v1687
    %1741 = vmatprep.subr.bf16.mxu0 0
    %1742 = vmatpush1.bf16.msra.mxu0 %v1686
    %1743 = vmatprep.subr.bf16.mxu0 0
    %1744 = vmatpush1.bf16.msra.mxu0 %v1685
    %1745 = vmatprep.subr.bf16.mxu0 0
    %1746 = vmatpush2.bf16.msra.mxu0 %v1700
    %1747 = vmatprep.subr.bf16.mxu0 0
    %1748 = vmatpush2.bf16.msra.mxu0 %v1699
    %1749 = vmatprep.subr.bf16.mxu0 0
    %1750 = vmatpush2.bf16.msra.mxu0 %v1698
    %1751 = vmatprep.subr.bf16.mxu0 0
    %1752 = vmatpush2.bf16.msra.mxu0 %v1697
    %1753 = vmatprep.subr.bf16.mxu0 0
    %1754 = vmatpush2.bf16.msra.mxu0 %v1696
    %1755 = vmatprep.subr.bf16.mxu0 0
    %1756 = vmatpush2.bf16.msra.mxu0 %v1695
    %1757 = vmatprep.subr.bf16.mxu0 0
    %1758 = vmatpush2.bf16.msra.mxu0 %v1694
    %1759 = vmatprep.subr.bf16.mxu0 0
    %1760 = vmatpush2.bf16.msra.mxu0 %v1693
    %1761 = vmatprep.mubr.bf16.mxu0 %v1556
    %1762 = vmatmul.mubr.bf16.gmra.mxu0 %v1555
    %v1763 = vpop.f32.mrf.mxu0
    %v1764 = vadd.f32 %v1603, %v1763
    %v1765 = vpop.f32.mrf.mxu0
    %v1766 = vpop.f32.mrf.mxu0
    %v1767 = vpop.f32.mrf.mxu0
    %1768 = vdwg.mxu0
    %1769 = vmatprep.subr.bf16.mxu0 0
    %1770 = vmatpush1.bf16.msra.mxu0 0
    %1771 = vmatprep.subr.bf16.mxu0 0
    %1772 = vmatpush1.bf16.msra.mxu0 0
    %1773 = vmatprep.subr.bf16.mxu0 0
    %1774 = vmatpush1.bf16.msra.mxu0 0
    %1775 = vmatprep.subr.bf16.mxu0 0
    %1776 = vmatpush1.bf16.msra.mxu0 0
    %1777 = vmatprep.subr.bf16.mxu0 0
    %1778 = vmatpush1.bf16.msra.mxu0 %v1704
    %1779 = vmatprep.subr.bf16.mxu0 0
    %1780 = vmatpush1.bf16.msra.mxu0 %v1703
    %1781 = vmatprep.subr.bf16.mxu0 0
    %1782 = vmatpush1.bf16.msra.mxu0 %v1702
    %1783 = vmatprep.subr.bf16.mxu0 0
    %1784 = vmatpush1.bf16.msra.mxu0 %v1701
    %1785 = vmatprep.subr.bf16.mxu0 0
    %1786 = vmatpush2.bf16.msra.mxu0 0
    %1787 = vmatprep.subr.bf16.mxu0 0
    %1788 = vmatpush2.bf16.msra.mxu0 0
    %1789 = vmatprep.subr.bf16.mxu0 0
    %1790 = vmatpush2.bf16.msra.mxu0 0
    %1791 = vmatprep.subr.bf16.mxu0 0
    %1792 = vmatpush2.bf16.msra.mxu0 0
    %1793 = vmatprep.subr.bf16.mxu0 0
    %1794 = vmatpush2.bf16.msra.mxu0 0
    %1795 = vmatprep.subr.bf16.mxu0 0
    %1796 = vmatpush2.bf16.msra.mxu0 0
    %1797 = vmatprep.subr.bf16.mxu0 0
    %1798 = vmatpush2.bf16.msra.mxu0 0
    %1799 = vmatprep.subr.bf16.mxu0 0
    %1800 = vmatpush2.bf16.msra.mxu0 0
    %1801 = vmatprep.mubr.bf16.mxu0 0
    %1802 = vmatmul.mubr.bf16.gmra.mxu0 %v1727
    %v1803 = vpop.f32.mrf.mxu0
    %v1804 = vadd.f32 %v1764, %v1803
    %v1805 = vpop.f32.mrf.mxu0
    %v1806 = vpop.f32.mrf.mxu0
    %v1807 = vpop.f32.mrf.mxu0
    %1808 = vdwg.mxu0
    %v1809 = vmax.f32 %v1804, 0.0
    %v1810 = vpack.c.bf16 %v1809, %v1809
    %v1811 = vld [vmem:[%s7] sm:$0xf]
    %v1812 = vld [vmem:[%s7 + $0x4] sm:$0xf]
    %v1813 = vld [vmem:[%s7 + $0x8] sm:$0xf]
    %v1814 = vld [vmem:[%s7 + $0xc] sm:$0xf]
    %v1815 = vld [vmem:[%s7 + $0x10] sm:$0xf]
    %v1816 = vld [vmem:[%s7 + $0x14] sm:$0xf]
    %v1817 = vld [vmem:[%s7 + $0x18] sm:$0x1]
    %v1818 = vld [vmem:[%s8] sm:$0x1]
    %v1820 = vlaneseq
    %v1821 = vshrl.u32 %v1820, 7
    %v1822 = vsub.s32 0, %v1821
    %v1823 = vrot.slane %v1818, %v1822
    %v1832 = vunpack.c.l.b16 %v1811
    %v1833 = vunpack.c.l.b16 %v1812
    %v1834 = vunpack.c.l.b16 %v1813
    %v1835 = vunpack.c.l.b16 %v1814
    %v1836 = vunpack.c.l.b16 %v1815
    %v1837 = vunpack.c.l.b16 %v1816
    %v1838 = vunpack.c.l.b16 %v1817
    %v1839 = vpack.c.b16 %v1833, %v1832
    %v1840 = vpack.c.b16 %v1835, %v1834
    %v1841 = vpack.c.b16 %v1837, %v1836
    %v1842 = vpack.c.b16 %v1838, %v1838
    %vm1846 = vcmask 408576
    %v1848 = vsel %vm1846, %v1810, 0
    %vm1850 = vcmask 1040384
    %v1852 = vsel %vm1850, %v1842, 0
    %1854 = vmatprep.subr.bf16.mxu0 0
    %1855 = vmatpush1.bf16.msra.mxu0 0
    %1856 = vmatprep.subr.bf16.mxu0 0
    %1857 = vmatpush1.bf16.msra.mxu0 0
    %1858 = vmatprep.subr.bf16.mxu0 0
    %1859 = vmatpush1.bf16.msra.mxu0 0
    %1860 = vmatprep.subr.bf16.mxu0 0
    %1861 = vmatpush1.bf16.msra.mxu0 0
    %1862 = vmatprep.subr.bf16.mxu0 0
    %1863 = vmatpush1.bf16.msra.mxu0 %v1852
    %1864 = vmatprep.subr.bf16.mxu0 0
    %1865 = vmatpush1.bf16.msra.mxu0 %v1841
    %1866 = vmatprep.subr.bf16.mxu0 0
    %1867 = vmatpush1.bf16.msra.mxu0 %v1840
    %1868 = vmatprep.subr.bf16.mxu0 0
    %1869 = vmatpush1.bf16.msra.mxu0 %v1839
    %1870 = vmatprep.subr.bf16.mxu0 0
    %1871 = vmatpush2.bf16.msra.mxu0 0
    %1872 = vmatprep.subr.bf16.mxu0 0
    %1873 = vmatpush2.bf16.msra.mxu0 0
    %1874 = vmatprep.subr.bf16.mxu0 0
    %1875 = vmatpush2.bf16.msra.mxu0 0
    %1876 = vmatprep.subr.bf16.mxu0 0
    %1877 = vmatpush2.bf16.msra.mxu0 0
    %1878 = vmatprep.subr.bf16.mxu0 0
    %1879 = vmatpush2.bf16.msra.mxu0 0
    %1880 = vmatprep.subr.bf16.mxu0 0
    %1881 = vmatpush2.bf16.msra.mxu0 0
    %1882 = vmatprep.subr.bf16.mxu0 0
    %1883 = vmatpush2.bf16.msra.mxu0 0
    %1884 = vmatprep.subr.bf16.mxu0 0
    %1885 = vmatpush2.bf16.msra.mxu0 0
    %1886 = vmatprep.mubr.bf16.mxu0 0
    %1887 = vmatmul.mubr.bf16.gmra.mxu0 %v1848
    %v1888 = vpop.f32.mrf.mxu0
    %v1889 = vadd.f32 %v1823, %v1888
    %v1890 = vpop.f32.mrf.mxu0
    %v1891 = vpop.f32.mrf.mxu0
    %v1892 = vpop.f32.mrf.mxu0
    %1893 = vdwg.mxu0
    %1894 = vmax.xlane.f32.xlu0 %v1889
    %v1895 = vpop.xlane.xlu0 %1894
    %v1896 = vsub.f32 %v1889, %v1895
    %v1897 = vmul.f32 %v1896, 1.442695
    %v1898 = vpow.pop %v1897
    %1899 = vadd.xlane.f32.xlu0 %v1898
    %v1900 = vpop.xlane.xlu0 %1899
    %v1901 = vrcp.pop %v1900
    %v1902 = vmul.f32 %v1898, %v1901
    %1903 = vst [vmem:[#allocation2] sm:$0xff] %v1902
    // Predicated region
    $region38: #{tpu_custom_call.1} parent=1 // pred_check
      _
    $region39: #{tpu_custom_call.1} parent=1 // pred_check_branch
      %1905 = sbr.rel (0) target = $region41
    $region40: #{tpu_custom_call.1} parent=1 // pred_region
      %s1907 = ssub.s32 128, 128
      %1908 = vsyncadd [#allocation3], %s1907
      %s1910 = sshll.u32 [#allocation2], 4
      %s1911 = int_to_ptr.vmem [resolvable:$true] %s1910
      %1913 = dma.vmem_to_hbm [thread:$0]  %s1911, 128, %s9, [#allocation3]
    $region41: #{tpu_custom_call.1} parent=1 // pred_fallthru
      _
    // Predicated region
    $region42: #{tpu_custom_call.1} parent=1 // pred_check
      _
    $region43: #{tpu_custom_call.1} parent=1 // pred_check_branch
      %1915 = sbr.rel (0) target = $region45
    $region44: #{tpu_custom_call.1} parent=1 // pred_region
      %1916 = dma.done [#allocation3], 128
    $region45: #{tpu_custom_call.1} parent=1 // pred_fallthru
      _
    %1917 = vsyncpa [#allocation3], 1

</llo_original>
